<compile_context>
chip_gen: v7x
topology: tpu7x:2x2x1
jax: 0.10.0
libtpu: 0.0.40
codegen_flags: <defaults>
</compile_context>

<pallas_src>
import jax
import jax.numpy as jnp
from jax.experimental import pallas as pl
from jax.experimental.pallas import tpu as pltpu


def _round_up(x, m):
    return ((x + m - 1) // m) * m


def _pick_tile(n_pad, preferred):
    """Largest multiple of 128 that is <= preferred and divides n_pad."""
    t = max(128, min(preferred, n_pad))
    t = (t // 128) * 128
    while n_pad % t:
        t -= 128
    return t


def _pad2d(a, rows, cols, dtype):
    """Cast + zero-pad `a` to (rows, cols)/dtype; no-ops skipped when aligned."""
    if a.dtype != dtype:
        a = a.astype(dtype)
    if a.shape == (rows, cols):
        return a
    return jnp.zeros((rows, cols), dtype).at[: a.shape[0], : a.shape[1]].set(a)


# ---------------- Stage 1: XW = inputs @ W (one row tile per grid step) -----


def _xw_kernel(x_ref, w_ref, o_ref):
    o_ref[...] = jnp.dot(
        x_ref[...], w_ref[...], preferred_element_type=jnp.float32
    ).astype(o_ref.dtype)


# ---------------- Stage 2: out = LeakyReLU(adj @ XW) ------------------------
# Both variants accumulate directly into the f32 output block (resident across
# the k axis because its block index is constant along k).


def _adj_xw_lrelu_resident_kernel(adj_ref, xw_ref, o_ref):
    """XW is fully VMEM-resident; slice its k-th row block each step."""
    k = pl.program_id(1)
    tk = adj_ref.shape[1]

    @pl.when(k == 0)
    def _():
        o_ref[...] = jnp.zeros_like(o_ref)

    start = pl.multiple_of(k * tk, tk)
    xw_tile = xw_ref[pl.ds(start, tk), :]
    o_ref[...] += jnp.dot(
        adj_ref[...], xw_tile, preferred_element_type=jnp.float32
    )

    @pl.when(k == pl.num_programs(1) - 1)
    def _():
        out = o_ref[...]
        o_ref[...] = jnp.maximum(out, 0.2 * out)  # LeakyReLU(0.2)


def _adj_xw_lrelu_tiled_kernel(adj_ref, xw_ref, o_ref):
    """XW streamed per (tk, c_out) block (fallback when too big to be resident)."""
    k = pl.program_id(1)

    @pl.when(k == 0)
    def _():
        o_ref[...] = jnp.zeros_like(o_ref)

    o_ref[...] += jnp.dot(
        adj_ref[...], xw_ref[...], preferred_element_type=jnp.float32
    )

    @pl.when(k == pl.num_programs(1) - 1)
    def _():
        out = o_ref[...]
        o_ref[...] = jnp.maximum(out, 0.2 * out)  # LeakyReLU(0.2)


# ---------------- Wrapper ----------------------------------------------------


def graph_conv(
    inputs,
    adj,
    w,
    *,
    tm=1024,
    tk=1024,
    matmul_dtype=jnp.bfloat16,      # bf16 operands, f32 accumulation (MXU-native).
    xw_resident_bytes=4 * 1024 * 1024,
    vmem_limit_bytes=32 * 1024 * 1024,
):
    """Pallas GraphConv forward: LeakyReLU_{0.2}(adj @ (inputs @ w)).

    matmul_dtype=None keeps full f32 numerics (matches PyTorch exactly);
    the default bf16 halves the dominant adj HBM stream and runs the MXU at
    full rate while still accumulating in f32.
    """
    n, c_in = inputs.shape
    c_out = w.shape[1]
    assert adj.shape == (n, n)
    assert w.shape[0] == c_in
    out_dtype = inputs.dtype

    mm_dtype = None if matmul_dtype is None else jnp.dtype(matmul_dtype)
    xw_dtype = jnp.float32 if mm_dtype is None else mm_dtype
    adj_dtype = adj.dtype if mm_dtype is None else mm_dtype

    # Lane-dense, (8,128)-friendly padded shapes. Zero padding is exact.
    c_in_p = _round_up(c_in, 128)
    c_out_p = _round_up(c_out, 128)
    n_p = _round_up(n, 128)
    tm = _pick_tile(n_p, tm)
    tk = _pick_tile(n_p, tk)

    x_p = _pad2d(inputs, n_p, c_in_p, inputs.dtype)
    w_p = _pad2d(w, c_in_p, c_out_p, w.dtype)
    # adj is the dominant HBM stream: at most one cast + one pad pass, both
    # skipped when adj is already aligned / already in the matmul dtype.
    adj_p = _pad2d(adj, n_p, n_p, adj_dtype)

    # ---- Stage 1: XW (emitted directly in the stage-2 matmul dtype) --------
    xw = pl.pallas_call(
        _xw_kernel,
        out_shape=jax.ShapeDtypeStruct((n_p, c_out_p), xw_dtype),
        grid_spec=pltpu.PrefetchScalarGridSpec(
            num_scalar_prefetch=0,
            grid=(n_p // tm,),
            in_specs=[
                pl.BlockSpec((tm, c_in_p), lambda i: (i, 0)),
                pl.BlockSpec((c_in_p, c_out_p), lambda i: (0, 0)),
            ],
            out_specs=pl.BlockSpec((tm, c_out_p), lambda i: (i, 0)),
        ),
        compiler_params=pltpu.CompilerParams(
            dimension_semantics=("parallel",),
            vmem_limit_bytes=vmem_limit_bytes,
        ),
    )(x_p, w_p)

    # ---- Stage 2: adj @ XW, fused LeakyReLU ---------------------------------
    xw_bytes = n_p * c_out_p * jnp.dtype(xw_dtype).itemsize
    if xw_bytes <= xw_resident_bytes:
        # XW loaded once (block index constant over the whole grid); only adj
        # streams from HBM.
        kernel = _adj_xw_lrelu_resident_kernel
        xw_spec = pl.BlockSpec((n_p, c_out_p), lambda i, k: (0, 0))
    else:
        kernel = _adj_xw_lrelu_tiled_kernel
        xw_spec = pl.BlockSpec((tk, c_out_p), lambda i, k: (k, 0))

    out_p = pl.pallas_call(
        kernel,
        out_shape=jax.ShapeDtypeStruct((n_p, c_out_p), jnp.float32),
        grid_spec=pltpu.PrefetchScalarGridSpec(
            num_scalar_prefetch=0,
            grid=(n_p // tm, n_p // tk),
            in_specs=[
                pl.BlockSpec((tm, tk), lambda i, k: (i, k)),  # adj tile
                xw_spec,                                       # XW (resident/tiled)
            ],
            out_specs=pl.BlockSpec((tm, c_out_p), lambda i, k: (i, 0)),
        ),
        compiler_params=pltpu.CompilerParams(
            dimension_semantics=("parallel", "arbitrary"),
            vmem_limit_bytes=vmem_limit_bytes,
        ),
    )(adj_p, xw)

    out = out_p[:n, :c_out]
    if out.dtype != out_dtype:
        out = out.astype(out_dtype)
    return out


if __name__ == "__main__":
    # Small shapes; N=1000 exercises the padding path (pads to 1024 x 128).
    N, C_IN, C_OUT = 1000, 64, 64

    key = jax.random.PRNGKey(0)
    k_x, k_adj = jax.random.split(key)

    inputs = jax.random.normal(k_x, (N, C_IN), dtype=jnp.float32)
    adj = jax.random.uniform(k_adj, (N, N), dtype=jnp.float32)
    # torch.nn.init.eye_(self.w): identity matrix.
    w = jnp.eye(C_IN, C_OUT, dtype=jnp.float32)
    # TODO(synk): nn.Dropout path (dropout=True) omitted — module default is dropout=False.

    xw_ref = jnp.dot(inputs, w, preferred_element_type=jnp.float32)

    # 1) Default path: bf16 operands, f32 accumulation, resident XW, big tiles.
    out_bf16 = jax.block_until_ready(graph_conv(inputs, adj, w))
    ref_bf16 = jnp.dot(
        adj.astype(jnp.bfloat16),
        xw_ref.astype(jnp.bfloat16),
        preferred_element_type=jnp.float32,
    )
    ref_bf16 = jnp.maximum(ref_bf16, 0.2 * ref_bf16)
    assert out_bf16.shape == (N, C_OUT)
    assert jnp.allclose(out_bf16, ref_bf16, atol=5e-2, rtol=2e-2)

    # 2) Full-f32 path (faithful to PyTorch numerics), small tiles to exercise
    #    the multi-tile reduction grid with resident XW.
    ref_f32 = jnp.dot(adj, xw_ref, preferred_element_type=jnp.float32,
                      precision=jax.lax.Precision.HIGHEST)
    ref_f32 = jnp.maximum(ref_f32, 0.2 * ref_f32)
    out_f32 = jax.block_until_ready(
        graph_conv(inputs, adj, w, tm=256, tk=256, matmul_dtype=None)
    )
    assert jnp.allclose(out_f32, ref_f32, atol=5e-2, rtol=1e-2)

    # 3) Force the tiled-XW fallback kernel to make sure it also runs clean.
    out_tiled = jax.block_until_ready(
        graph_conv(inputs, adj, w, tm=256, tk=512, matmul_dtype=None,
                   xw_resident_bytes=0)
    )
    assert jnp.allclose(out_tiled, ref_f32, atol=5e-2, rtol=1e-2)

    print("KERNEL_OK")
</pallas_src>

<mosaic_0001>
module attributes {stable_mosaic.version = 11 : i64} {
  func.func @_xw_kernel(%arg0: i32, %arg1: memref<1024x128xf32, #tpu.memory_space<vmem>>, %arg2: memref<128x128xf32, #tpu.memory_space<vmem>>, %arg3: memref<1024x128xbf16, #tpu.memory_space<vmem>>) attributes {dimension_semantics = [#tpu.dimension_semantics<parallel>], iteration_bounds = array<i64: 1>, scalar_prefetch = 0 : i64, scratch_operands = 0 : i64, tpu.core_type = #tpu.core_type<tc>, window_params = [{transform_indices = @transform_0, window_bounds = array<i64: 1024, 128>}, {pipeline_mode = #tpu.pipeline_mode<synchronous>, transform_indices = @transform_1, window_bounds = array<i64: 128, 128>}, {transform_indices = @transform_2, window_bounds = array<i64: 1024, 128>}]} {
    %c0 = arith.constant 0 : index
    %c0_0 = arith.constant 0 : index
    %0 = vector.load %arg1[%c0, %c0_0] : memref<1024x128xf32, #tpu.memory_space<vmem>>, vector<1024x128xf32>
    %c0_1 = arith.constant 0 : index
    %c0_2 = arith.constant 0 : index
    %1 = vector.load %arg2[%c0_1, %c0_2] : memref<128x128xf32, #tpu.memory_space<vmem>>, vector<128x128xf32>
    %cst = arith.constant dense<0.000000e+00> : vector<1024x128xf32>
    %2 = tpu.matmul %0, %1, %cst {dimension_numbers = #tpu.dot_dimension_numbers<[1], [0], [0], [1], [0, 0, 1, 1], [], []>} : vector<1024x128xf32>, vector<128x128xf32>, vector<1024x128xf32> -> vector<1024x128xf32>
    %3 = arith.truncf %2 : vector<1024x128xf32> to vector<1024x128xbf16>
    %c0_3 = arith.constant 0 : index
    %c0_4 = arith.constant 0 : index
    %4 = vector.load %arg3[%c0_3, %c0_4] : memref<1024x128xbf16, #tpu.memory_space<vmem>>, vector<1024x128xbf16>
    tpu.vector_store %arg3[%c0_3, %c0_4], %3 {strides = array<i32>} : memref<1024x128xbf16, #tpu.memory_space<vmem>>, vector<1024x128xbf16>,
    return
  }
  func.func @transform_0(%arg0: i32) -> (i32, i32) {
    %c0_i32 = arith.constant 0 : i32
    %c0_i32_0 = arith.constant 0 : i32
    return %arg0, %c0_i32 : i32, i32
  }
  func.func @transform_1(%arg0: i32) -> (i32, i32) {
    %c0_i32 = arith.constant 0 : i32
    %c0_i32_0 = arith.constant 0 : i32
    %c0_i32_1 = arith.constant 0 : i32
    return %c0_i32, %c0_i32_0 : i32, i32
  }
  func.func @transform_2(%arg0: i32) -> (i32, i32) {
    %c0_i32 = arith.constant 0 : i32
    %c0_i32_0 = arith.constant 0 : i32
    return %arg0, %c0_i32 : i32, i32
  }
}

</mosaic_0001>

<llo_original>
// kernel: tpu_custom_call.1
$region0: #{tpu_custom_call.1}
  #allocation0 [shape = 'u32[]', space=smem, size = 0x4, offset = 0x4, fixed_abs, tag = 'smem constant byte address 0x4 - core index']
  #allocation1 [shape = 'u32[144,128]{1,0:T(1,128)}', space=vmem, size = 0x12000, scoped, tag = 'internal scratch']
  %s0 = inlined_call_operand.hbm [shape: f32[1024,128], index: 0, kind: input, shape index: {}]
  %s1 = inlined_call_operand.hbm [shape: f32[128,128], index: 1, kind: input, shape index: {}]
  %s2 = inlined_call_operand.hbm [shape: bf16[1024,128], index: 2, kind: output, shape index: {}]
  %s3 = sld [smem:[#allocation0]]
  $region26: #{tpu_custom_call.1} parent=0
    _
  %s5 = ssub.s32 1, %s3
  %s6 = scalar_select 0, %s5, %s3
  $region1: #{tpu_custom_call.1} parent=0
    #allocation2 [shape = 'u8[524288]{0}', space=vmem, size = 0x80000, scoped, tag = 'input window, operand 0, single buffered']
    #allocation3 [shape = 's32[1]{0}', space=sflag, size = 0x4, scoped, tag = 'scoped memory for tpu_custom_call.1']
    #allocation4 [shape = 's32[1]{0}', space=sflag, size = 0x4, scoped, tag = 'scoped memory for tpu_custom_call.1']
    #allocation5 [shape = 'u8[65536]{0}', space=vmem, size = 0x10000, scoped, tag = 'input window, operand 1, single buffered']
    #allocation6 [shape = 's32[1]{0}', space=sflag, size = 0x4, scoped, tag = 'scoped memory for tpu_custom_call.1']
    #allocation7 [shape = 'u8[262144]{0}', space=vmem, size = 0x40000, scoped, tag = 'output window, operand 0, single buffered']
    %7 = vsyncpa [#allocation3], 0
    %8 = vsyncpa [#allocation6], 0
    %9 = vsyncpa [#allocation4], 0
    // Predicated region
    $region2: #{tpu_custom_call.1} parent=1 // pred_check
      _
    $region3: #{tpu_custom_call.1} parent=1 // pred_check_branch
      %11 = sbr.rel (0) target = $region5
    $region4: #{tpu_custom_call.1} parent=1 // pred_region
      %s13 = ssub.s32 16384, 16384
      %14 = vsyncadd [#allocation3], %s13
      %s15 = sshll.u32 [#allocation2], 4
      %s16 = int_to_ptr.vmem [resolvable:$true] %s15
      %21 = dma.hbm_to_vmem [thread:$0]  %s0, 16384, %s16, [#allocation3], 128, 128, 8
    $region5: #{tpu_custom_call.1} parent=1 // pred_fallthru
      _
    // Predicated region
    $region6: #{tpu_custom_call.1} parent=1 // pred_check
      _
    $region7: #{tpu_custom_call.1} parent=1 // pred_check_branch
      %23 = sbr.rel (0) target = $region9
    $region8: #{tpu_custom_call.1} parent=1 // pred_region
      %s25 = ssub.s32 2048, 2048
      %26 = vsyncadd [#allocation6], %s25
      %s27 = sshll.u32 [#allocation5], 4
      %s28 = int_to_ptr.vmem [resolvable:$true] %s27
      %33 = dma.hbm_to_vmem [thread:$0]  %s1, 2048, %s28, [#allocation6], 128, 128, 8
    $region9: #{tpu_custom_call.1} parent=1 // pred_fallthru
      _
    // Predicated region
    $region10: #{tpu_custom_call.1} parent=1 // pred_check
      _
    $region11: #{tpu_custom_call.1} parent=1 // pred_check_branch
      %35 = sbr.rel (0) target = $region13
    $region12: #{tpu_custom_call.1} parent=1 // pred_region
      %36 = dma.done [#allocation3], 16384
    $region13: #{tpu_custom_call.1} parent=1 // pred_fallthru
      _
    // Predicated region
    $region14: #{tpu_custom_call.1} parent=1 // pred_check
      _
    $region15: #{tpu_custom_call.1} parent=1 // pred_check_branch
      %38 = sbr.rel (0) target = $region17
    $region16: #{tpu_custom_call.1} parent=1 // pred_region
      %39 = dma.done [#allocation6], 2048
    $region17: #{tpu_custom_call.1} parent=1 // pred_fallthru
      _
    %v40 = vld [vmem:[#allocation2] sm:$0xff]
    %v41 = vld [vmem:[#allocation2 + $0x8] sm:$0xff]
    %v42 = vld [vmem:[#allocation2 + $0x10] sm:$0xff]
    %v43 = vld [vmem:[#allocation2 + $0x18] sm:$0xff]
    %v44 = vld [vmem:[#allocation2 + $0x20] sm:$0xff]
    %v45 = vld [vmem:[#allocation2 + $0x28] sm:$0xff]
    %v46 = vld [vmem:[#allocation2 + $0x30] sm:$0xff]
    %v47 = vld [vmem:[#allocation2 + $0x38] sm:$0xff]
    %v48 = vld [vmem:[#allocation2 + $0x40] sm:$0xff]
    %v49 = vld [vmem:[#allocation2 + $0x48] sm:$0xff]
    %v50 = vld [vmem:[#allocation2 + $0x50] sm:$0xff]
    %v51 = vld [vmem:[#allocation2 + $0x58] sm:$0xff]
    %v52 = vld [vmem:[#allocation2 + $0x60] sm:$0xff]
    %v53 = vld [vmem:[#allocation2 + $0x68] sm:$0xff]
    %v54 = vld [vmem:[#allocation2 + $0x70] sm:$0xff]
    %v55 = vld [vmem:[#allocation2 + $0x78] sm:$0xff]
    %v56 = vld [vmem:[#allocation2 + $0x80] sm:$0xff]
    %v57 = vld [vmem:[#allocation2 + $0x88] sm:$0xff]
    %v58 = vld [vmem:[#allocation2 + $0x90] sm:$0xff]
    %v59 = vld [vmem:[#allocation2 + $0x98] sm:$0xff]
    %v60 = vld [vmem:[#allocation2 + $0xa0] sm:$0xff]
    %v61 = vld [vmem:[#allocation2 + $0xa8] sm:$0xff]
    %v62 = vld [vmem:[#allocation2 + $0xb0] sm:$0xff]
    %v63 = vld [vmem:[#allocation2 + $0xb8] sm:$0xff]
    %v64 = vld [vmem:[#allocation2 + $0xc0] sm:$0xff]
    %v65 = vld [vmem:[#allocation2 + $0xc8] sm:$0xff]
    %v66 = vld [vmem:[#allocation2 + $0xd0] sm:$0xff]
    %v67 = vld [vmem:[#allocation2 + $0xd8] sm:$0xff]
    %v68 = vld [vmem:[#allocation2 + $0xe0] sm:$0xff]
    %v69 = vld [vmem:[#allocation2 + $0xe8] sm:$0xff]
    %v70 = vld [vmem:[#allocation2 + $0xf0] sm:$0xff]
    %v71 = vld [vmem:[#allocation2 + $0xf8] sm:$0xff]
    %v72 = vld [vmem:[#allocation2 + $0x100] sm:$0xff]
    %v73 = vld [vmem:[#allocation2 + $0x108] sm:$0xff]
    %v74 = vld [vmem:[#allocation2 + $0x110] sm:$0xff]
    %v75 = vld [vmem:[#allocation2 + $0x118] sm:$0xff]
    %v76 = vld [vmem:[#allocation2 + $0x120] sm:$0xff]
    %v77 = vld [vmem:[#allocation2 + $0x128] sm:$0xff]
    %v78 = vld [vmem:[#allocation2 + $0x130] sm:$0xff]
    %v79 = vld [vmem:[#allocation2 + $0x138] sm:$0xff]
    %v80 = vld [vmem:[#allocation2 + $0x140] sm:$0xff]
    %v81 = vld [vmem:[#allocation2 + $0x148] sm:$0xff]
    %v82 = vld [vmem:[#allocation2 + $0x150] sm:$0xff]
    %v83 = vld [vmem:[#allocation2 + $0x158] sm:$0xff]
    %v84 = vld [vmem:[#allocation2 + $0x160] sm:$0xff]
    %v85 = vld [vmem:[#allocation2 + $0x168] sm:$0xff]
    %v86 = vld [vmem:[#allocation2 + $0x170] sm:$0xff]
    %v87 = vld [vmem:[#allocation2 + $0x178] sm:$0xff]
    %v88 = vld [vmem:[#allocation2 + $0x180] sm:$0xff]
    %v89 = vld [vmem:[#allocation2 + $0x188] sm:$0xff]
    %v90 = vld [vmem:[#allocation2 + $0x190] sm:$0xff]
    %v91 = vld [vmem:[#allocation2 + $0x198] sm:$0xff]
    %v92 = vld [vmem:[#allocation2 + $0x1a0] sm:$0xff]
    %v93 = vld [vmem:[#allocation2 + $0x1a8] sm:$0xff]
    %v94 = vld [vmem:[#allocation2 + $0x1b0] sm:$0xff]
    %v95 = vld [vmem:[#allocation2 + $0x1b8] sm:$0xff]
    %v96 = vld [vmem:[#allocation2 + $0x1c0] sm:$0xff]
    %v97 = vld [vmem:[#allocation2 + $0x1c8] sm:$0xff]
    %v98 = vld [vmem:[#allocation2 + $0x1d0] sm:$0xff]
    %v99 = vld [vmem:[#allocation2 + $0x1d8] sm:$0xff]
    %v100 = vld [vmem:[#allocation2 + $0x1e0] sm:$0xff]
    %v101 = vld [vmem:[#allocation2 + $0x1e8] sm:$0xff]
    %v102 = vld [vmem:[#allocation2 + $0x1f0] sm:$0xff]
    %v103 = vld [vmem:[#allocation2 + $0x1f8] sm:$0xff]
    %v104 = vld [vmem:[#allocation2 + $0x200] sm:$0xff]
    %v105 = vld [vmem:[#allocation2 + $0x208] sm:$0xff]
    %v106 = vld [vmem:[#allocation2 + $0x210] sm:$0xff]
    %v107 = vld [vmem:[#allocation2 + $0x218] sm:$0xff]
    %v108 = vld [vmem:[#allocation2 + $0x220] sm:$0xff]
    %v109 = vld [vmem:[#allocation2 + $0x228] sm:$0xff]
    %v110 = vld [vmem:[#allocation2 + $0x230] sm:$0xff]
    %v111 = vld [vmem:[#allocation2 + $0x238] sm:$0xff]
    %v112 = vld [vmem:[#allocation2 + $0x240] sm:$0xff]
    %v113 = vld [vmem:[#allocation2 + $0x248] sm:$0xff]
    %v114 = vld [vmem:[#allocation2 + $0x250] sm:$0xff]
    %v115 = vld [vmem:[#allocation2 + $0x258] sm:$0xff]
    %v116 = vld [vmem:[#allocation2 + $0x260] sm:$0xff]
    %v117 = vld [vmem:[#allocation2 + $0x268] sm:$0xff]
    %v118 = vld [vmem:[#allocation2 + $0x270] sm:$0xff]
    %v119 = vld [vmem:[#allocation2 + $0x278] sm:$0xff]
    %v120 = vld [vmem:[#allocation2 + $0x280] sm:$0xff]
    %v121 = vld [vmem:[#allocation2 + $0x288] sm:$0xff]
    %v122 = vld [vmem:[#allocation2 + $0x290] sm:$0xff]
    %v123 = vld [vmem:[#allocation2 + $0x298] sm:$0xff]
    %v124 = vld [vmem:[#allocation2 + $0x2a0] sm:$0xff]
    %v125 = vld [vmem:[#allocation2 + $0x2a8] sm:$0xff]
    %v126 = vld [vmem:[#allocation2 + $0x2b0] sm:$0xff]
    %v127 = vld [vmem:[#allocation2 + $0x2b8] sm:$0xff]
    %v128 = vld [vmem:[#allocation2 + $0x2c0] sm:$0xff]
    %v129 = vld [vmem:[#allocation2 + $0x2c8] sm:$0xff]
    %v130 = vld [vmem:[#allocation2 + $0x2d0] sm:$0xff]
    %v131 = vld [vmem:[#allocation2 + $0x2d8] sm:$0xff]
    %v132 = vld [vmem:[#allocation2 + $0x2e0] sm:$0xff]
    %v133 = vld [vmem:[#allocation2 + $0x2e8] sm:$0xff]
    %v134 = vld [vmem:[#allocation2 + $0x2f0] sm:$0xff]
    %v135 = vld [vmem:[#allocation2 + $0x2f8] sm:$0xff]
    %v136 = vld [vmem:[#allocation2 + $0x300] sm:$0xff]
    %v137 = vld [vmem:[#allocation2 + $0x308] sm:$0xff]
    %v138 = vld [vmem:[#allocation2 + $0x310] sm:$0xff]
    %v139 = vld [vmem:[#allocation2 + $0x318] sm:$0xff]
    %v140 = vld [vmem:[#allocation2 + $0x320] sm:$0xff]
    %v141 = vld [vmem:[#allocation2 + $0x328] sm:$0xff]
    %v142 = vld [vmem:[#allocation2 + $0x330] sm:$0xff]
    %v143 = vld [vmem:[#allocation2 + $0x338] sm:$0xff]
    %v144 = vld [vmem:[#allocation2 + $0x340] sm:$0xff]
    %v145 = vld [vmem:[#allocation2 + $0x348] sm:$0xff]
    %v146 = vld [vmem:[#allocation2 + $0x350] sm:$0xff]
    %v147 = vld [vmem:[#allocation2 + $0x358] sm:$0xff]
    %v148 = vld [vmem:[#allocation2 + $0x360] sm:$0xff]
    %v149 = vld [vmem:[#allocation2 + $0x368] sm:$0xff]
    %v150 = vld [vmem:[#allocation2 + $0x370] sm:$0xff]
    %v151 = vld [vmem:[#allocation2 + $0x378] sm:$0xff]
    %v152 = vld [vmem:[#allocation2 + $0x380] sm:$0xff]
    %v153 = vld [vmem:[#allocation2 + $0x388] sm:$0xff]
    %v154 = vld [vmem:[#allocation2 + $0x390] sm:$0xff]
    %v155 = vld [vmem:[#allocation2 + $0x398] sm:$0xff]
    %v156 = vld [vmem:[#allocation2 + $0x3a0] sm:$0xff]
    %v157 = vld [vmem:[#allocation2 + $0x3a8] sm:$0xff]
    %v158 = vld [vmem:[#allocation2 + $0x3b0] sm:$0xff]
    %v159 = vld [vmem:[#allocation2 + $0x3b8] sm:$0xff]
    %v160 = vld [vmem:[#allocation2 + $0x3c0] sm:$0xff]
    %v161 = vld [vmem:[#allocation2 + $0x3c8] sm:$0xff]
    %v162 = vld [vmem:[#allocation2 + $0x3d0] sm:$0xff]
    %v163 = vld [vmem:[#allocation2 + $0x3d8] sm:$0xff]
    %v164 = vld [vmem:[#allocation2 + $0x3e0] sm:$0xff]
    %v165 = vld [vmem:[#allocation2 + $0x3e8] sm:$0xff]
    %v166 = vld [vmem:[#allocation2 + $0x3f0] sm:$0xff]
    %v167 = vld [vmem:[#allocation2 + $0x3f8] sm:$0xff]
    %v168 = vld [vmem:[#allocation5] sm:$0xff]
    %v169 = vld [vmem:[#allocation5 + $0x8] sm:$0xff]
    %v170 = vld [vmem:[#allocation5 + $0x10] sm:$0xff]
    %v171 = vld [vmem:[#allocation5 + $0x18] sm:$0xff]
    %v172 = vld [vmem:[#allocation5 + $0x20] sm:$0xff]
    %v173 = vld [vmem:[#allocation5 + $0x28] sm:$0xff]
    %v174 = vld [vmem:[#allocation5 + $0x30] sm:$0xff]
    %v175 = vld [vmem:[#allocation5 + $0x38] sm:$0xff]
    %v176 = vld [vmem:[#allocation5 + $0x40] sm:$0xff]
    %v177 = vld [vmem:[#allocation5 + $0x48] sm:$0xff]
    %v178 = vld [vmem:[#allocation5 + $0x50] sm:$0xff]
    %v179 = vld [vmem:[#allocation5 + $0x58] sm:$0xff]
    %v180 = vld [vmem:[#allocation5 + $0x60] sm:$0xff]
    %v181 = vld [vmem:[#allocation5 + $0x68] sm:$0xff]
    %v182 = vld [vmem:[#allocation5 + $0x70] sm:$0xff]
    %v183 = vld [vmem:[#allocation5 + $0x78] sm:$0xff]
    %184 = vmatprep.subr.mxu0 0.0
    %185 = vmatpush1.msra.mxu0 %v168
    %186 = vmatprep.subr.mxu0 0.0
    %187 = vmatpush1.msra.mxu0 %v169
    %188 = vmatprep.subr.mxu0 0.0
    %189 = vmatpush1.msra.mxu0 %v170
    %190 = vmatprep.subr.mxu0 0.0
    %191 = vmatpush1.msra.mxu0 %v171
    %192 = vmatprep.subr.mxu0 0.0
    %193 = vmatpush1.msra.mxu0 %v172
    %194 = vmatprep.subr.mxu0 0.0
    %195 = vmatpush1.msra.mxu0 %v173
    %196 = vmatprep.subr.mxu0 0.0
    %197 = vmatpush1.msra.mxu0 %v174
    %198 = vmatprep.subr.mxu0 0.0
    %199 = vmatpush1.msra.mxu0 %v175
    %200 = vmatprep.subr.mxu0 0.0
    %201 = vmatpush1.msra.mxu0 %v176
    %202 = vmatprep.subr.mxu0 0.0
    %203 = vmatpush1.msra.mxu0 %v177
    %204 = vmatprep.subr.mxu0 0.0
    %205 = vmatpush1.msra.mxu0 %v178
    %206 = vmatprep.subr.mxu0 0.0
    %207 = vmatpush1.msra.mxu0 %v179
    %208 = vmatprep.subr.mxu0 0.0
    %209 = vmatpush1.msra.mxu0 %v180
    %210 = vmatprep.subr.mxu0 0.0
    %211 = vmatpush1.msra.mxu0 %v181
    %212 = vmatprep.subr.mxu0 0.0
    %213 = vmatpush1.msra.mxu0 %v182
    %214 = vmatprep.subr.mxu0 0.0
    %215 = vmatpush1.msra.mxu0 %v183
    %216 = vmatprep.subr.mxu0 0.0
    %217 = vmatpush1.msra.mxu0 0.0
    %218 = vmatprep.subr.mxu0 0.0
    %219 = vmatpush1.msra.mxu0 0.0
    %220 = vmatprep.subr.mxu0 0.0
    %221 = vmatpush1.msra.mxu0 0.0
    %222 = vmatprep.subr.mxu0 0.0
    %223 = vmatpush1.msra.mxu0 0.0
    %224 = vmatprep.subr.mxu0 0.0
    %225 = vmatpush1.msra.mxu0 0.0
    %226 = vmatprep.subr.mxu0 0.0
    %227 = vmatpush1.msra.mxu0 0.0
    %228 = vmatprep.subr.mxu0 0.0
    %229 = vmatpush1.msra.mxu0 0.0
    %230 = vmatprep.subr.mxu0 0.0
    %231 = vmatpush1.msra.mxu0 0.0
    %232 = vmatprep.subr.mxu0 0.0
    %233 = vmatpush1.msra.mxu0 0.0
    %234 = vmatprep.subr.mxu0 0.0
    %235 = vmatpush1.msra.mxu0 0.0
    %236 = vmatprep.subr.mxu0 0.0
    %237 = vmatpush1.msra.mxu0 0.0
    %238 = vmatprep.subr.mxu0 0.0
    %239 = vmatpush1.msra.mxu0 0.0
    %240 = vmatprep.subr.mxu0 0.0
    %241 = vmatpush1.msra.mxu0 0.0
    %242 = vmatprep.subr.mxu0 0.0
    %243 = vmatpush1.msra.mxu0 0.0
    %244 = vmatprep.subr.mxu0 0.0
    %245 = vmatpush1.msra.mxu0 0.0
    %246 = vmatprep.subr.mxu0 0.0
    %247 = vmatpush1.msra.mxu0 0.0
    %248 = vmatprep.mubr.f32.mxu0 0.0
    %249 = vmatmul.mubr.f32.gmra.mrb[0].mxu0 %v40
    %v250 = vpop.f32.mrb[0].mxu0
    %v251 = vadd.f32 0.0, %v250
    %v252 = vpop.f32.mrb[0].mxu0
    %253 = vmatprep.mubr.f32.mxu0 0.0
    %254 = vmatmul.mubr.f32.gmra.mrb[0].mxu0 %v41
    %v255 = vpop.f32.mrb[0].mxu0
    %v256 = vadd.f32 0.0, %v255
    %v257 = vpop.f32.mrb[0].mxu0
    %258 = vmatprep.mubr.f32.mxu0 0.0
    %259 = vmatmul.mubr.f32.gmra.mrb[0].mxu0 %v42
    %v260 = vpop.f32.mrb[0].mxu0
    %v261 = vadd.f32 0.0, %v260
    %v262 = vpop.f32.mrb[0].mxu0
    %263 = vmatprep.mubr.f32.mxu0 0.0
    %264 = vmatmul.mubr.f32.gmra.mrb[0].mxu0 %v43
    %v265 = vpop.f32.mrb[0].mxu0
    %v266 = vadd.f32 0.0, %v265
    %v267 = vpop.f32.mrb[0].mxu0
    %268 = vmatprep.mubr.f32.mxu0 0.0
    %269 = vmatmul.mubr.f32.gmra.mrb[0].mxu0 %v44
    %v270 = vpop.f32.mrb[0].mxu0
    %v271 = vadd.f32 0.0, %v270
    %v272 = vpop.f32.mrb[0].mxu0
    %273 = vmatprep.mubr.f32.mxu0 0.0
    %274 = vmatmul.mubr.f32.gmra.mrb[0].mxu0 %v45
    %v275 = vpop.f32.mrb[0].mxu0
    %v276 = vadd.f32 0.0, %v275
    %v277 = vpop.f32.mrb[0].mxu0
    %278 = vmatprep.mubr.f32.mxu0 0.0
    %279 = vmatmul.mubr.f32.gmra.mrb[0].mxu0 %v46
    %v280 = vpop.f32.mrb[0].mxu0
    %v281 = vadd.f32 0.0, %v280
    %v282 = vpop.f32.mrb[0].mxu0
    %283 = vmatprep.mubr.f32.mxu0 0.0
    %284 = vmatmul.mubr.f32.gmra.mrb[0].mxu0 %v47
    %v285 = vpop.f32.mrb[0].mxu0
    %v286 = vadd.f32 0.0, %v285
    %v287 = vpop.f32.mrb[0].mxu0
    %288 = vmatprep.mubr.f32.mxu0 0.0
    %289 = vmatmul.mubr.f32.gmra.mrb[0].mxu0 %v48
    %v290 = vpop.f32.mrb[0].mxu0
    %v291 = vadd.f32 0.0, %v290
    %v292 = vpop.f32.mrb[0].mxu0
    %293 = vmatprep.mubr.f32.mxu0 0.0
    %294 = vmatmul.mubr.f32.gmra.mrb[0].mxu0 %v49
    %v295 = vpop.f32.mrb[0].mxu0
    %v296 = vadd.f32 0.0, %v295
    %v297 = vpop.f32.mrb[0].mxu0
    %298 = vmatprep.mubr.f32.mxu0 0.0
    %299 = vmatmul.mubr.f32.gmra.mrb[0].mxu0 %v50
    %v300 = vpop.f32.mrb[0].mxu0
    %v301 = vadd.f32 0.0, %v300
    %v302 = vpop.f32.mrb[0].mxu0
    %303 = vmatprep.mubr.f32.mxu0 0.0
    %304 = vmatmul.mubr.f32.gmra.mrb[0].mxu0 %v51
    %v305 = vpop.f32.mrb[0].mxu0
    %v306 = vadd.f32 0.0, %v305
    %v307 = vpop.f32.mrb[0].mxu0
    %308 = vmatprep.mubr.f32.mxu0 0.0
    %309 = vmatmul.mubr.f32.gmra.mrb[0].mxu0 %v52
    %v310 = vpop.f32.mrb[0].mxu0
    %v311 = vadd.f32 0.0, %v310
    %v312 = vpop.f32.mrb[0].mxu0
    %313 = vmatprep.mubr.f32.mxu0 0.0
    %314 = vmatmul.mubr.f32.gmra.mrb[0].mxu0 %v53
    %v315 = vpop.f32.mrb[0].mxu0
    %v316 = vadd.f32 0.0, %v315
    %v317 = vpop.f32.mrb[0].mxu0
    %318 = vmatprep.mubr.f32.mxu0 0.0
    %319 = vmatmul.mubr.f32.gmra.mrb[0].mxu0 %v54
    %v320 = vpop.f32.mrb[0].mxu0
    %v321 = vadd.f32 0.0, %v320
    %v322 = vpop.f32.mrb[0].mxu0
    %323 = vmatprep.mubr.f32.mxu0 0.0
    %324 = vmatmul.mubr.f32.gmra.mrb[0].mxu0 %v55
    %v325 = vpop.f32.mrb[0].mxu0
    %v326 = vadd.f32 0.0, %v325
    %v327 = vpop.f32.mrb[0].mxu0
    %328 = vmatprep.mubr.f32.mxu0 0.0
    %329 = vmatmul.mubr.f32.gmra.mrb[0].mxu0 %v56
    %v330 = vpop.f32.mrb[0].mxu0
    %v331 = vadd.f32 0.0, %v330
    %v332 = vpop.f32.mrb[0].mxu0
    %333 = vmatprep.mubr.f32.mxu0 0.0
    %334 = vmatmul.mubr.f32.gmra.mrb[0].mxu0 %v57
    %v335 = vpop.f32.mrb[0].mxu0
    %v336 = vadd.f32 0.0, %v335
    %v337 = vpop.f32.mrb[0].mxu0
    %338 = vmatprep.mubr.f32.mxu0 0.0
    %339 = vmatmul.mubr.f32.gmra.mrb[0].mxu0 %v58
    %v340 = vpop.f32.mrb[0].mxu0
    %v341 = vadd.f32 0.0, %v340
    %v342 = vpop.f32.mrb[0].mxu0
    %343 = vmatprep.mubr.f32.mxu0 0.0
    %344 = vmatmul.mubr.f32.gmra.mrb[0].mxu0 %v59
    %v345 = vpop.f32.mrb[0].mxu0
    %v346 = vadd.f32 0.0, %v345
    %v347 = vpop.f32.mrb[0].mxu0
    %348 = vmatprep.mubr.f32.mxu0 0.0
    %349 = vmatmul.mubr.f32.gmra.mrb[0].mxu0 %v60
    %v350 = vpop.f32.mrb[0].mxu0
    %v351 = vadd.f32 0.0, %v350
    %v352 = vpop.f32.mrb[0].mxu0
    %353 = vmatprep.mubr.f32.mxu0 0.0
    %354 = vmatmul.mubr.f32.gmra.mrb[0].mxu0 %v61
    %v355 = vpop.f32.mrb[0].mxu0
    %v356 = vadd.f32 0.0, %v355
    %v357 = vpop.f32.mrb[0].mxu0
    %358 = vmatprep.mubr.f32.mxu0 0.0
    %359 = vmatmul.mubr.f32.gmra.mrb[0].mxu0 %v62
    %v360 = vpop.f32.mrb[0].mxu0
    %v361 = vadd.f32 0.0, %v360
    %v362 = vpop.f32.mrb[0].mxu0
    %363 = vmatprep.mubr.f32.mxu0 0.0
    %364 = vmatmul.mubr.f32.gmra.mrb[0].mxu0 %v63
    %v365 = vpop.f32.mrb[0].mxu0
    %v366 = vadd.f32 0.0, %v365
    %v367 = vpop.f32.mrb[0].mxu0
    %368 = vmatprep.mubr.f32.mxu0 0.0
    %369 = vmatmul.mubr.f32.gmra.mrb[0].mxu0 %v64
    %v370 = vpop.f32.mrb[0].mxu0
    %v371 = vadd.f32 0.0, %v370
    %v372 = vpop.f32.mrb[0].mxu0
    %373 = vmatprep.mubr.f32.mxu0 0.0
    %374 = vmatmul.mubr.f32.gmra.mrb[0].mxu0 %v65
    %v375 = vpop.f32.mrb[0].mxu0
    %v376 = vadd.f32 0.0, %v375
    %v377 = vpop.f32.mrb[0].mxu0
    %378 = vmatprep.mubr.f32.mxu0 0.0
    %379 = vmatmul.mubr.f32.gmra.mrb[0].mxu0 %v66
    %v380 = vpop.f32.mrb[0].mxu0
    %v381 = vadd.f32 0.0, %v380
    %v382 = vpop.f32.mrb[0].mxu0
    %383 = vmatprep.mubr.f32.mxu0 0.0
    %384 = vmatmul.mubr.f32.gmra.mrb[0].mxu0 %v67
    %v385 = vpop.f32.mrb[0].mxu0
    %v386 = vadd.f32 0.0, %v385
    %v387 = vpop.f32.mrb[0].mxu0
    %388 = vmatprep.mubr.f32.mxu0 0.0
    %389 = vmatmul.mubr.f32.gmra.mrb[0].mxu0 %v68
    %v390 = vpop.f32.mrb[0].mxu0
    %v391 = vadd.f32 0.0, %v390
    %v392 = vpop.f32.mrb[0].mxu0
    %393 = vmatprep.mubr.f32.mxu0 0.0
    %394 = vmatmul.mubr.f32.gmra.mrb[0].mxu0 %v69
    %v395 = vpop.f32.mrb[0].mxu0
    %v396 = vadd.f32 0.0, %v395
    %v397 = vpop.f32.mrb[0].mxu0
    %398 = vmatprep.mubr.f32.mxu0 0.0
    %399 = vmatmul.mubr.f32.gmra.mrb[0].mxu0 %v70
    %v400 = vpop.f32.mrb[0].mxu0
    %v401 = vadd.f32 0.0, %v400
    %v402 = vpop.f32.mrb[0].mxu0
    %403 = vmatprep.mubr.f32.mxu0 0.0
    %404 = vmatmul.mubr.f32.gmra.mrb[0].mxu0 %v71
    %v405 = vpop.f32.mrb[0].mxu0
    %v406 = vadd.f32 0.0, %v405
    %v407 = vpop.f32.mrb[0].mxu0
    %408 = vmatprep.mubr.f32.mxu0 0.0
    %409 = vmatmul.mubr.f32.gmra.mrb[0].mxu0 %v72
    %v410 = vpop.f32.mrb[0].mxu0
    %v411 = vadd.f32 0.0, %v410
    %v412 = vpop.f32.mrb[0].mxu0
    %413 = vmatprep.mubr.f32.mxu0 0.0
    %414 = vmatmul.mubr.f32.gmra.mrb[0].mxu0 %v73
    %v415 = vpop.f32.mrb[0].mxu0
    %v416 = vadd.f32 0.0, %v415
    %v417 = vpop.f32.mrb[0].mxu0
    %418 = vmatprep.mubr.f32.mxu0 0.0
    %419 = vmatmul.mubr.f32.gmra.mrb[0].mxu0 %v74
    %v420 = vpop.f32.mrb[0].mxu0
    %v421 = vadd.f32 0.0, %v420
    %v422 = vpop.f32.mrb[0].mxu0
    %423 = vmatprep.mubr.f32.mxu0 0.0
    %424 = vmatmul.mubr.f32.gmra.mrb[0].mxu0 %v75
    %v425 = vpop.f32.mrb[0].mxu0
    %v426 = vadd.f32 0.0, %v425
    %v427 = vpop.f32.mrb[0].mxu0
    %428 = vmatprep.mubr.f32.mxu0 0.0
    %429 = vmatmul.mubr.f32.gmra.mrb[0].mxu0 %v76
    %v430 = vpop.f32.mrb[0].mxu0
    %v431 = vadd.f32 0.0, %v430
    %v432 = vpop.f32.mrb[0].mxu0
    %433 = vmatprep.mubr.f32.mxu0 0.0
    %434 = vmatmul.mubr.f32.gmra.mrb[0].mxu0 %v77
    %v435 = vpop.f32.mrb[0].mxu0
    %v436 = vadd.f32 0.0, %v435
    %v437 = vpop.f32.mrb[0].mxu0
    %438 = vmatprep.mubr.f32.mxu0 0.0
    %439 = vmatmul.mubr.f32.gmra.mrb[0].mxu0 %v78
    %v440 = vpop.f32.mrb[0].mxu0
    %v441 = vadd.f32 0.0, %v440
    %v442 = vpop.f32.mrb[0].mxu0
    %443 = vmatprep.mubr.f32.mxu0 0.0
    %444 = vmatmul.mubr.f32.gmra.mrb[0].mxu0 %v79
    %v445 = vpop.f32.mrb[0].mxu0
    %v446 = vadd.f32 0.0, %v445
    %v447 = vpop.f32.mrb[0].mxu0
    %448 = vmatprep.mubr.f32.mxu0 0.0
    %449 = vmatmul.mubr.f32.gmra.mrb[0].mxu0 %v80
    %v450 = vpop.f32.mrb[0].mxu0
    %v451 = vadd.f32 0.0, %v450
    %v452 = vpop.f32.mrb[0].mxu0
    %453 = vmatprep.mubr.f32.mxu0 0.0
    %454 = vmatmul.mubr.f32.gmra.mrb[0].mxu0 %v81
    %v455 = vpop.f32.mrb[0].mxu0
    %v456 = vadd.f32 0.0, %v455
    %v457 = vpop.f32.mrb[0].mxu0
    %458 = vmatprep.mubr.f32.mxu0 0.0
    %459 = vmatmul.mubr.f32.gmra.mrb[0].mxu0 %v82
    %v460 = vpop.f32.mrb[0].mxu0
    %v461 = vadd.f32 0.0, %v460
    %v462 = vpop.f32.mrb[0].mxu0
    %463 = vmatprep.mubr.f32.mxu0 0.0
    %464 = vmatmul.mubr.f32.gmra.mrb[0].mxu0 %v83
    %v465 = vpop.f32.mrb[0].mxu0
    %v466 = vadd.f32 0.0, %v465
    %v467 = vpop.f32.mrb[0].mxu0
    %468 = vmatprep.mubr.f32.mxu0 0.0
    %469 = vmatmul.mubr.f32.gmra.mrb[0].mxu0 %v84
    %v470 = vpop.f32.mrb[0].mxu0
    %v471 = vadd.f32 0.0, %v470
    %v472 = vpop.f32.mrb[0].mxu0
    %473 = vmatprep.mubr.f32.mxu0 0.0
    %474 = vmatmul.mubr.f32.gmra.mrb[0].mxu0 %v85
    %v475 = vpop.f32.mrb[0].mxu0
    %v476 = vadd.f32 0.0, %v475
    %v477 = vpop.f32.mrb[0].mxu0
    %478 = vmatprep.mubr.f32.mxu0 0.0
    %479 = vmatmul.mubr.f32.gmra.mrb[0].mxu0 %v86
    %v480 = vpop.f32.mrb[0].mxu0
    %v481 = vadd.f32 0.0, %v480
    %v482 = vpop.f32.mrb[0].mxu0
    %483 = vmatprep.mubr.f32.mxu0 0.0
    %484 = vmatmul.mubr.f32.gmra.mrb[0].mxu0 %v87
    %v485 = vpop.f32.mrb[0].mxu0
    %v486 = vadd.f32 0.0, %v485
    %v487 = vpop.f32.mrb[0].mxu0
    %488 = vmatprep.mubr.f32.mxu0 0.0
    %489 = vmatmul.mubr.f32.gmra.mrb[0].mxu0 %v88
    %v490 = vpop.f32.mrb[0].mxu0
    %v491 = vadd.f32 0.0, %v490
    %v492 = vpop.f32.mrb[0].mxu0
    %493 = vmatprep.mubr.f32.mxu0 0.0
    %494 = vmatmul.mubr.f32.gmra.mrb[0].mxu0 %v89
    %v495 = vpop.f32.mrb[0].mxu0
    %v496 = vadd.f32 0.0, %v495
    %v497 = vpop.f32.mrb[0].mxu0
    %498 = vmatprep.mubr.f32.mxu0 0.0
    %499 = vmatmul.mubr.f32.gmra.mrb[0].mxu0 %v90
    %v500 = vpop.f32.mrb[0].mxu0
    %v501 = vadd.f32 0.0, %v500
    %v502 = vpop.f32.mrb[0].mxu0
    %503 = vmatprep.mubr.f32.mxu0 0.0
    %504 = vmatmul.mubr.f32.gmra.mrb[0].mxu0 %v91
    %v505 = vpop.f32.mrb[0].mxu0
    %v506 = vadd.f32 0.0, %v505
    %v507 = vpop.f32.mrb[0].mxu0
    %508 = vmatprep.mubr.f32.mxu0 0.0
    %509 = vmatmul.mubr.f32.gmra.mrb[0].mxu0 %v92
    %v510 = vpop.f32.mrb[0].mxu0
    %v511 = vadd.f32 0.0, %v510
    %v512 = vpop.f32.mrb[0].mxu0
    %513 = vmatprep.mubr.f32.mxu0 0.0
    %514 = vmatmul.mubr.f32.gmra.mrb[0].mxu0 %v93
    %v515 = vpop.f32.mrb[0].mxu0
    %v516 = vadd.f32 0.0, %v515
    %v517 = vpop.f32.mrb[0].mxu0
    %518 = vmatprep.mubr.f32.mxu0 0.0
    %519 = vmatmul.mubr.f32.gmra.mrb[0].mxu0 %v94
    %v520 = vpop.f32.mrb[0].mxu0
    %v521 = vadd.f32 0.0, %v520
    %v522 = vpop.f32.mrb[0].mxu0
    %523 = vmatprep.mubr.f32.mxu0 0.0
    %524 = vmatmul.mubr.f32.gmra.mrb[0].mxu0 %v95
    %v525 = vpop.f32.mrb[0].mxu0
    %v526 = vadd.f32 0.0, %v525
    %v527 = vpop.f32.mrb[0].mxu0
    %528 = vmatprep.mubr.f32.mxu0 0.0
    %529 = vmatmul.mubr.f32.gmra.mrb[0].mxu0 %v96
    %v530 = vpop.f32.mrb[0].mxu0
    %v531 = vadd.f32 0.0, %v530
    %v532 = vpop.f32.mrb[0].mxu0
    %533 = vmatprep.mubr.f32.mxu0 0.0
    %534 = vmatmul.mubr.f32.gmra.mrb[0].mxu0 %v97
    %v535 = vpop.f32.mrb[0].mxu0
    %v536 = vadd.f32 0.0, %v535
    %v537 = vpop.f32.mrb[0].mxu0
    %538 = vmatprep.mubr.f32.mxu0 0.0
    %539 = vmatmul.mubr.f32.gmra.mrb[0].mxu0 %v98
    %v540 = vpop.f32.mrb[0].mxu0
    %v541 = vadd.f32 0.0, %v540
    %v542 = vpop.f32.mrb[0].mxu0
    %543 = vmatprep.mubr.f32.mxu0 0.0
    %544 = vmatmul.mubr.f32.gmra.mrb[0].mxu0 %v99
    %v545 = vpop.f32.mrb[0].mxu0
    %v546 = vadd.f32 0.0, %v545
    %v547 = vpop.f32.mrb[0].mxu0
    %548 = vmatprep.mubr.f32.mxu0 0.0
    %549 = vmatmul.mubr.f32.gmra.mrb[0].mxu0 %v100
    %v550 = vpop.f32.mrb[0].mxu0
    %v551 = vadd.f32 0.0, %v550
    %v552 = vpop.f32.mrb[0].mxu0
    %553 = vmatprep.mubr.f32.mxu0 0.0
    %554 = vmatmul.mubr.f32.gmra.mrb[0].mxu0 %v101
    %v555 = vpop.f32.mrb[0].mxu0
    %v556 = vadd.f32 0.0, %v555
    %v557 = vpop.f32.mrb[0].mxu0
    %558 = vmatprep.mubr.f32.mxu0 0.0
    %559 = vmatmul.mubr.f32.gmra.mrb[0].mxu0 %v102
    %v560 = vpop.f32.mrb[0].mxu0
    %v561 = vadd.f32 0.0, %v560
    %v562 = vpop.f32.mrb[0].mxu0
    %563 = vmatprep.mubr.f32.mxu0 0.0
    %564 = vmatmul.mubr.f32.gmra.mrb[0].mxu0 %v103
    %v565 = vpop.f32.mrb[0].mxu0
    %v566 = vadd.f32 0.0, %v565
    %v567 = vpop.f32.mrb[0].mxu0
    %568 = vmatprep.mubr.f32.mxu0 0.0
    %569 = vmatmul.mubr.f32.gmra.mrb[0].mxu0 %v104
    %v570 = vpop.f32.mrb[0].mxu0
    %v571 = vadd.f32 0.0, %v570
    %v572 = vpop.f32.mrb[0].mxu0
    %573 = vmatprep.mubr.f32.mxu0 0.0
    %574 = vmatmul.mubr.f32.gmra.mrb[0].mxu0 %v105
    %v575 = vpop.f32.mrb[0].mxu0
    %v576 = vadd.f32 0.0, %v575
    %v577 = vpop.f32.mrb[0].mxu0
    %578 = vmatprep.mubr.f32.mxu0 0.0
    %579 = vmatmul.mubr.f32.gmra.mrb[0].mxu0 %v106
    %v580 = vpop.f32.mrb[0].mxu0
    %v581 = vadd.f32 0.0, %v580
    %v582 = vpop.f32.mrb[0].mxu0
    %583 = vmatprep.mubr.f32.mxu0 0.0
    %584 = vmatmul.mubr.f32.gmra.mrb[0].mxu0 %v107
    %v585 = vpop.f32.mrb[0].mxu0
    %v586 = vadd.f32 0.0, %v585
    %v587 = vpop.f32.mrb[0].mxu0
    %588 = vmatprep.mubr.f32.mxu0 0.0
    %589 = vmatmul.mubr.f32.gmra.mrb[0].mxu0 %v108
    %v590 = vpop.f32.mrb[0].mxu0
    %v591 = vadd.f32 0.0, %v590
    %v592 = vpop.f32.mrb[0].mxu0
    %593 = vmatprep.mubr.f32.mxu0 0.0
    %594 = vmatmul.mubr.f32.gmra.mrb[0].mxu0 %v109
    %v595 = vpop.f32.mrb[0].mxu0
    %v596 = vadd.f32 0.0, %v595
    %v597 = vpop.f32.mrb[0].mxu0
    %598 = vmatprep.mubr.f32.mxu0 0.0
    %599 = vmatmul.mubr.f32.gmra.mrb[0].mxu0 %v110
    %v600 = vpop.f32.mrb[0].mxu0
    %v601 = vadd.f32 0.0, %v600
    %v602 = vpop.f32.mrb[0].mxu0
    %603 = vmatprep.mubr.f32.mxu0 0.0
    %604 = vmatmul.mubr.f32.gmra.mrb[0].mxu0 %v111
    %v605 = vpop.f32.mrb[0].mxu0
    %v606 = vadd.f32 0.0, %v605
    %v607 = vpop.f32.mrb[0].mxu0
    %608 = vmatprep.mubr.f32.mxu0 0.0
    %609 = vmatmul.mubr.f32.gmra.mrb[0].mxu0 %v112
    %v610 = vpop.f32.mrb[0].mxu0
    %v611 = vadd.f32 0.0, %v610
    %v612 = vpop.f32.mrb[0].mxu0
    %613 = vmatprep.mubr.f32.mxu0 0.0
    %614 = vmatmul.mubr.f32.gmra.mrb[0].mxu0 %v113
    %v615 = vpop.f32.mrb[0].mxu0
    %v616 = vadd.f32 0.0, %v615
    %v617 = vpop.f32.mrb[0].mxu0
    %618 = vmatprep.mubr.f32.mxu0 0.0
    %619 = vmatmul.mubr.f32.gmra.mrb[0].mxu0 %v114
    %v620 = vpop.f32.mrb[0].mxu0
    %v621 = vadd.f32 0.0, %v620
    %v622 = vpop.f32.mrb[0].mxu0
    %623 = vmatprep.mubr.f32.mxu0 0.0
    %624 = vmatmul.mubr.f32.gmra.mrb[0].mxu0 %v115
    %v625 = vpop.f32.mrb[0].mxu0
    %v626 = vadd.f32 0.0, %v625
    %v627 = vpop.f32.mrb[0].mxu0
    %628 = vmatprep.mubr.f32.mxu0 0.0
    %629 = vmatmul.mubr.f32.gmra.mrb[0].mxu0 %v116
    %v630 = vpop.f32.mrb[0].mxu0
    %v631 = vadd.f32 0.0, %v630
    %v632 = vpop.f32.mrb[0].mxu0
    %633 = vmatprep.mubr.f32.mxu0 0.0
    %634 = vmatmul.mubr.f32.gmra.mrb[0].mxu0 %v117
    %v635 = vpop.f32.mrb[0].mxu0
    %v636 = vadd.f32 0.0, %v635
    %v637 = vpop.f32.mrb[0].mxu0
    %638 = vmatprep.mubr.f32.mxu0 0.0
    %639 = vmatmul.mubr.f32.gmra.mrb[0].mxu0 %v118
    %v640 = vpop.f32.mrb[0].mxu0
    %v641 = vadd.f32 0.0, %v640
    %v642 = vpop.f32.mrb[0].mxu0
    %643 = vmatprep.mubr.f32.mxu0 0.0
    %644 = vmatmul.mubr.f32.gmra.mrb[0].mxu0 %v119
    %v645 = vpop.f32.mrb[0].mxu0
    %v646 = vadd.f32 0.0, %v645
    %v647 = vpop.f32.mrb[0].mxu0
    %648 = vmatprep.mubr.f32.mxu0 0.0
    %649 = vmatmul.mubr.f32.gmra.mrb[0].mxu0 %v120
    %v650 = vpop.f32.mrb[0].mxu0
    %v651 = vadd.f32 0.0, %v650
    %v652 = vpop.f32.mrb[0].mxu0
    %653 = vmatprep.mubr.f32.mxu0 0.0
    %654 = vmatmul.mubr.f32.gmra.mrb[0].mxu0 %v121
    %v655 = vpop.f32.mrb[0].mxu0
    %v656 = vadd.f32 0.0, %v655
    %v657 = vpop.f32.mrb[0].mxu0
    %658 = vmatprep.mubr.f32.mxu0 0.0
    %659 = vmatmul.mubr.f32.gmra.mrb[0].mxu0 %v122
    %v660 = vpop.f32.mrb[0].mxu0
    %v661 = vadd.f32 0.0, %v660
    %v662 = vpop.f32.mrb[0].mxu0
    %663 = vmatprep.mubr.f32.mxu0 0.0
    %664 = vmatmul.mubr.f32.gmra.mrb[0].mxu0 %v123
    %v665 = vpop.f32.mrb[0].mxu0
    %v666 = vadd.f32 0.0, %v665
    %v667 = vpop.f32.mrb[0].mxu0
    %668 = vmatprep.mubr.f32.mxu0 0.0
    %669 = vmatmul.mubr.f32.gmra.mrb[0].mxu0 %v124
    %v670 = vpop.f32.mrb[0].mxu0
    %v671 = vadd.f32 0.0, %v670
    %v672 = vpop.f32.mrb[0].mxu0
    %673 = vmatprep.mubr.f32.mxu0 0.0
    %674 = vmatmul.mubr.f32.gmra.mrb[0].mxu0 %v125
    %v675 = vpop.f32.mrb[0].mxu0
    %v676 = vadd.f32 0.0, %v675
    %v677 = vpop.f32.mrb[0].mxu0
    %678 = vmatprep.mubr.f32.mxu0 0.0
    %679 = vmatmul.mubr.f32.gmra.mrb[0].mxu0 %v126
    %v680 = vpop.f32.mrb[0].mxu0
    %v681 = vadd.f32 0.0, %v680
    %v682 = vpop.f32.mrb[0].mxu0
    %683 = vmatprep.mubr.f32.mxu0 0.0
    %684 = vmatmul.mubr.f32.gmra.mrb[0].mxu0 %v127
    %v685 = vpop.f32.mrb[0].mxu0
    %v686 = vadd.f32 0.0, %v685
    %v687 = vpop.f32.mrb[0].mxu0
    %688 = vmatprep.mubr.f32.mxu0 0.0
    %689 = vmatmul.mubr.f32.gmra.mrb[0].mxu0 %v128
    %v690 = vpop.f32.mrb[0].mxu0
    %v691 = vadd.f32 0.0, %v690
    %v692 = vpop.f32.mrb[0].mxu0
    %693 = vmatprep.mubr.f32.mxu0 0.0
    %694 = vmatmul.mubr.f32.gmra.mrb[0].mxu0 %v129
    %v695 = vpop.f32.mrb[0].mxu0
    %v696 = vadd.f32 0.0, %v695
    %v697 = vpop.f32.mrb[0].mxu0
    %698 = vmatprep.mubr.f32.mxu0 0.0
    %699 = vmatmul.mubr.f32.gmra.mrb[0].mxu0 %v130
    %v700 = vpop.f32.mrb[0].mxu0
    %v701 = vadd.f32 0.0, %v700
    %v702 = vpop.f32.mrb[0].mxu0
    %703 = vmatprep.mubr.f32.mxu0 0.0
    %704 = vmatmul.mubr.f32.gmra.mrb[0].mxu0 %v131
    %v705 = vpop.f32.mrb[0].mxu0
    %v706 = vadd.f32 0.0, %v705
    %v707 = vpop.f32.mrb[0].mxu0
    %708 = vmatprep.mubr.f32.mxu0 0.0
    %709 = vmatmul.mubr.f32.gmra.mrb[0].mxu0 %v132
    %v710 = vpop.f32.mrb[0].mxu0
    %v711 = vadd.f32 0.0, %v710
    %v712 = vpop.f32.mrb[0].mxu0
    %713 = vmatprep.mubr.f32.mxu0 0.0
    %714 = vmatmul.mubr.f32.gmra.mrb[0].mxu0 %v133
    %v715 = vpop.f32.mrb[0].mxu0
    %v716 = vadd.f32 0.0, %v715
    %v717 = vpop.f32.mrb[0].mxu0
    %718 = vmatprep.mubr.f32.mxu0 0.0
    %719 = vmatmul.mubr.f32.gmra.mrb[0].mxu0 %v134
    %v720 = vpop.f32.mrb[0].mxu0
    %v721 = vadd.f32 0.0, %v720
    %v722 = vpop.f32.mrb[0].mxu0
    %723 = vmatprep.mubr.f32.mxu0 0.0
    %724 = vmatmul.mubr.f32.gmra.mrb[0].mxu0 %v135
    %v725 = vpop.f32.mrb[0].mxu0
    %v726 = vadd.f32 0.0, %v725
    %v727 = vpop.f32.mrb[0].mxu0
    %728 = vmatprep.mubr.f32.mxu0 0.0
    %729 = vmatmul.mubr.f32.gmra.mrb[0].mxu0 %v136
    %v730 = vpop.f32.mrb[0].mxu0
    %v731 = vadd.f32 0.0, %v730
    %v732 = vpop.f32.mrb[0].mxu0
    %733 = vmatprep.mubr.f32.mxu0 0.0
    %734 = vmatmul.mubr.f32.gmra.mrb[0].mxu0 %v137
    %v735 = vpop.f32.mrb[0].mxu0
    %v736 = vadd.f32 0.0, %v735
    %v737 = vpop.f32.mrb[0].mxu0
    %738 = vmatprep.mubr.f32.mxu0 0.0
    %739 = vmatmul.mubr.f32.gmra.mrb[0].mxu0 %v138
    %v740 = vpop.f32.mrb[0].mxu0
    %v741 = vadd.f32 0.0, %v740
    %v742 = vpop.f32.mrb[0].mxu0
    %743 = vmatprep.mubr.f32.mxu0 0.0
    %744 = vmatmul.mubr.f32.gmra.mrb[0].mxu0 %v139
    %v745 = vpop.f32.mrb[0].mxu0
    %v746 = vadd.f32 0.0, %v745
    %v747 = vpop.f32.mrb[0].mxu0
    %748 = vmatprep.mubr.f32.mxu0 0.0
    %749 = vmatmul.mubr.f32.gmra.mrb[0].mxu0 %v140
    %v750 = vpop.f32.mrb[0].mxu0
    %v751 = vadd.f32 0.0, %v750
    %v752 = vpop.f32.mrb[0].mxu0
    %753 = vmatprep.mubr.f32.mxu0 0.0
    %754 = vmatmul.mubr.f32.gmra.mrb[0].mxu0 %v141
    %v755 = vpop.f32.mrb[0].mxu0
    %v756 = vadd.f32 0.0, %v755
    %v757 = vpop.f32.mrb[0].mxu0
    %758 = vmatprep.mubr.f32.mxu0 0.0
    %759 = vmatmul.mubr.f32.gmra.mrb[0].mxu0 %v142
    %v760 = vpop.f32.mrb[0].mxu0
    %v761 = vadd.f32 0.0, %v760
    %v762 = vpop.f32.mrb[0].mxu0
    %763 = vmatprep.mubr.f32.mxu0 0.0
    %764 = vmatmul.mubr.f32.gmra.mrb[0].mxu0 %v143
    %v765 = vpop.f32.mrb[0].mxu0
    %v766 = vadd.f32 0.0, %v765
    %v767 = vpop.f32.mrb[0].mxu0
    %768 = vmatprep.mubr.f32.mxu0 0.0
    %769 = vmatmul.mubr.f32.gmra.mrb[0].mxu0 %v144
    %v770 = vpop.f32.mrb[0].mxu0
    %v771 = vadd.f32 0.0, %v770
    %v772 = vpop.f32.mrb[0].mxu0
    %773 = vmatprep.mubr.f32.mxu0 0.0
    %774 = vmatmul.mubr.f32.gmra.mrb[0].mxu0 %v145
    %v775 = vpop.f32.mrb[0].mxu0
    %v776 = vadd.f32 0.0, %v775
    %v777 = vpop.f32.mrb[0].mxu0
    %778 = vmatprep.mubr.f32.mxu0 0.0
    %779 = vmatmul.mubr.f32.gmra.mrb[0].mxu0 %v146
    %v780 = vpop.f32.mrb[0].mxu0
    %v781 = vadd.f32 0.0, %v780
    %v782 = vpop.f32.mrb[0].mxu0
    %783 = vmatprep.mubr.f32.mxu0 0.0
    %784 = vmatmul.mubr.f32.gmra.mrb[0].mxu0 %v147
    %v785 = vpop.f32.mrb[0].mxu0
    %v786 = vadd.f32 0.0, %v785
    %v787 = vpop.f32.mrb[0].mxu0
    %788 = vmatprep.mubr.f32.mxu0 0.0
    %789 = vmatmul.mubr.f32.gmra.mrb[0].mxu0 %v148
    %v790 = vpop.f32.mrb[0].mxu0
    %v791 = vadd.f32 0.0, %v790
    %v792 = vpop.f32.mrb[0].mxu0
    %793 = vmatprep.mubr.f32.mxu0 0.0
    %794 = vmatmul.mubr.f32.gmra.mrb[0].mxu0 %v149
    %v795 = vpop.f32.mrb[0].mxu0
    %v796 = vadd.f32 0.0, %v795
    %v797 = vpop.f32.mrb[0].mxu0
    %798 = vmatprep.mubr.f32.mxu0 0.0
    %799 = vmatmul.mubr.f32.gmra.mrb[0].mxu0 %v150
    %v800 = vpop.f32.mrb[0].mxu0
    %v801 = vadd.f32 0.0, %v800
    %v802 = vpop.f32.mrb[0].mxu0
    %803 = vmatprep.mubr.f32.mxu0 0.0
    %804 = vmatmul.mubr.f32.gmra.mrb[0].mxu0 %v151
    %v805 = vpop.f32.mrb[0].mxu0
    %v806 = vadd.f32 0.0, %v805
    %v807 = vpop.f32.mrb[0].mxu0
    %808 = vmatprep.mubr.f32.mxu0 0.0
    %809 = vmatmul.mubr.f32.gmra.mrb[0].mxu0 %v152
    %v810 = vpop.f32.mrb[0].mxu0
    %v811 = vadd.f32 0.0, %v810
    %v812 = vpop.f32.mrb[0].mxu0
    %813 = vmatprep.mubr.f32.mxu0 0.0
    %814 = vmatmul.mubr.f32.gmra.mrb[0].mxu0 %v153
    %v815 = vpop.f32.mrb[0].mxu0
    %v816 = vadd.f32 0.0, %v815
    %v817 = vpop.f32.mrb[0].mxu0
    %818 = vmatprep.mubr.f32.mxu0 0.0
    %819 = vmatmul.mubr.f32.gmra.mrb[0].mxu0 %v154
    %v820 = vpop.f32.mrb[0].mxu0
    %v821 = vadd.f32 0.0, %v820
    %v822 = vpop.f32.mrb[0].mxu0
    %823 = vmatprep.mubr.f32.mxu0 0.0
    %824 = vmatmul.mubr.f32.gmra.mrb[0].mxu0 %v155
    %v825 = vpop.f32.mrb[0].mxu0
    %v826 = vadd.f32 0.0, %v825
    %v827 = vpop.f32.mrb[0].mxu0
    %828 = vmatprep.mubr.f32.mxu0 0.0
    %829 = vmatmul.mubr.f32.gmra.mrb[0].mxu0 %v156
    %v830 = vpop.f32.mrb[0].mxu0
    %v831 = vadd.f32 0.0, %v830
    %v832 = vpop.f32.mrb[0].mxu0
    %833 = vmatprep.mubr.f32.mxu0 0.0
    %834 = vmatmul.mubr.f32.gmra.mrb[0].mxu0 %v157
    %v835 = vpop.f32.mrb[0].mxu0
    %v836 = vadd.f32 0.0, %v835
    %v837 = vpop.f32.mrb[0].mxu0
    %838 = vmatprep.mubr.f32.mxu0 0.0
    %839 = vmatmul.mubr.f32.gmra.mrb[0].mxu0 %v158
    %v840 = vpop.f32.mrb[0].mxu0
    %v841 = vadd.f32 0.0, %v840
    %v842 = vpop.f32.mrb[0].mxu0
    %843 = vmatprep.mubr.f32.mxu0 0.0
    %844 = vmatmul.mubr.f32.gmra.mrb[0].mxu0 %v159
    %v845 = vpop.f32.mrb[0].mxu0
    %v846 = vadd.f32 0.0, %v845
    %v847 = vpop.f32.mrb[0].mxu0
    %848 = vmatprep.mubr.f32.mxu0 0.0
    %849 = vmatmul.mubr.f32.gmra.mrb[0].mxu0 %v160
    %v850 = vpop.f32.mrb[0].mxu0
    %v851 = vadd.f32 0.0, %v850
    %v852 = vpop.f32.mrb[0].mxu0
    %853 = vmatprep.mubr.f32.mxu0 0.0
    %854 = vmatmul.mubr.f32.gmra.mrb[0].mxu0 %v161
    %v855 = vpop.f32.mrb[0].mxu0
    %v856 = vadd.f32 0.0, %v855
    %v857 = vpop.f32.mrb[0].mxu0
    %858 = vmatprep.mubr.f32.mxu0 0.0
    %859 = vmatmul.mubr.f32.gmra.mrb[0].mxu0 %v162
    %v860 = vpop.f32.mrb[0].mxu0
    %v861 = vadd.f32 0.0, %v860
    %v862 = vpop.f32.mrb[0].mxu0
    %863 = vmatprep.mubr.f32.mxu0 0.0
    %864 = vmatmul.mubr.f32.gmra.mrb[0].mxu0 %v163
    %v865 = vpop.f32.mrb[0].mxu0
    %v866 = vadd.f32 0.0, %v865
    %v867 = vpop.f32.mrb[0].mxu0
    %868 = vmatprep.mubr.f32.mxu0 0.0
    %869 = vmatmul.mubr.f32.gmra.mrb[0].mxu0 %v164
    %v870 = vpop.f32.mrb[0].mxu0
    %v871 = vadd.f32 0.0, %v870
    %v872 = vpop.f32.mrb[0].mxu0
    %873 = vmatprep.mubr.f32.mxu0 0.0
    %874 = vmatmul.mubr.f32.gmra.mrb[0].mxu0 %v165
    %v875 = vpop.f32.mrb[0].mxu0
    %v876 = vadd.f32 0.0, %v875
    %v877 = vpop.f32.mrb[0].mxu0
    %878 = vmatprep.mubr.f32.mxu0 0.0
    %879 = vmatmul.mubr.f32.gmra.mrb[0].mxu0 %v166
    %v880 = vpop.f32.mrb[0].mxu0
    %v881 = vadd.f32 0.0, %v880
    %v882 = vpop.f32.mrb[0].mxu0
    %883 = vmatprep.mubr.f32.mxu0 0.0
    %884 = vmatmul.mubr.f32.gmra.mrb[0].mxu0 %v167
    %v885 = vpop.f32.mrb[0].mxu0
    %v886 = vadd.f32 0.0, %v885
    %v887 = vpop.f32.mrb[0].mxu0
    %888 = vdwg.mxu0
    %v889 = vpack.c.bf16 %v256, %v251
    %v890 = vpack.c.bf16 %v266, %v261
    %v891 = vpack.c.bf16 %v276, %v271
    %v892 = vpack.c.bf16 %v286, %v281
    %v893 = vpack.c.bf16 %v296, %v291
    %v894 = vpack.c.bf16 %v306, %v301
    %v895 = vpack.c.bf16 %v316, %v311
    %v896 = vpack.c.bf16 %v326, %v321
    %v897 = vpack.c.bf16 %v336, %v331
    %v898 = vpack.c.bf16 %v346, %v341
    %v899 = vpack.c.bf16 %v356, %v351
    %v900 = vpack.c.bf16 %v366, %v361
    %v901 = vpack.c.bf16 %v376, %v371
    %v902 = vpack.c.bf16 %v386, %v381
    %v903 = vpack.c.bf16 %v396, %v391
    %v904 = vpack.c.bf16 %v406, %v401
    %v905 = vpack.c.bf16 %v416, %v411
    %v906 = vpack.c.bf16 %v426, %v421
    %v907 = vpack.c.bf16 %v436, %v431
    %v908 = vpack.c.bf16 %v446, %v441
    %v909 = vpack.c.bf16 %v456, %v451
    %v910 = vpack.c.bf16 %v466, %v461
    %v911 = vpack.c.bf16 %v476, %v471
    %v912 = vpack.c.bf16 %v486, %v481
    %v913 = vpack.c.bf16 %v496, %v491
    %v914 = vpack.c.bf16 %v506, %v501
    %v915 = vpack.c.bf16 %v516, %v511
    %v916 = vpack.c.bf16 %v526, %v521
    %v917 = vpack.c.bf16 %v536, %v531
    %v918 = vpack.c.bf16 %v546, %v541
    %v919 = vpack.c.bf16 %v556, %v551
    %v920 = vpack.c.bf16 %v566, %v561
    %v921 = vpack.c.bf16 %v576, %v571
    %v922 = vpack.c.bf16 %v586, %v581
    %v923 = vpack.c.bf16 %v596, %v591
    %v924 = vpack.c.bf16 %v606, %v601
    %v925 = vpack.c.bf16 %v616, %v611
    %v926 = vpack.c.bf16 %v626, %v621
    %v927 = vpack.c.bf16 %v636, %v631
    %v928 = vpack.c.bf16 %v646, %v641
    %v929 = vpack.c.bf16 %v656, %v651
    %v930 = vpack.c.bf16 %v666, %v661
    %v931 = vpack.c.bf16 %v676, %v671
    %v932 = vpack.c.bf16 %v686, %v681
    %v933 = vpack.c.bf16 %v696, %v691
    %v934 = vpack.c.bf16 %v706, %v701
    %v935 = vpack.c.bf16 %v716, %v711
    %v936 = vpack.c.bf16 %v726, %v721
    %v937 = vpack.c.bf16 %v736, %v731
    %v938 = vpack.c.bf16 %v746, %v741
    %v939 = vpack.c.bf16 %v756, %v751
    %v940 = vpack.c.bf16 %v766, %v761
    %v941 = vpack.c.bf16 %v776, %v771
    %v942 = vpack.c.bf16 %v786, %v781
    %v943 = vpack.c.bf16 %v796, %v791
    %v944 = vpack.c.bf16 %v806, %v801
    %v945 = vpack.c.bf16 %v816, %v811
    %v946 = vpack.c.bf16 %v826, %v821
    %v947 = vpack.c.bf16 %v836, %v831
    %v948 = vpack.c.bf16 %v846, %v841
    %v949 = vpack.c.bf16 %v856, %v851
    %v950 = vpack.c.bf16 %v866, %v861
    %v951 = vpack.c.bf16 %v876, %v871
    %v952 = vpack.c.bf16 %v886, %v881
    %v1017 = vunpack.c.l.b16 %v889
    %v1018 = vunpack.c.h.b16 %v889
    %v1019 = vunpack.c.l.b16 %v890
    %v1020 = vunpack.c.h.b16 %v890
    %v1021 = vunpack.c.l.b16 %v891
    %v1022 = vunpack.c.h.b16 %v891
    %v1023 = vunpack.c.l.b16 %v892
    %v1024 = vunpack.c.h.b16 %v892
    %v1025 = vunpack.c.l.b16 %v893
    %v1026 = vunpack.c.h.b16 %v893
    %v1027 = vunpack.c.l.b16 %v894
    %v1028 = vunpack.c.h.b16 %v894
    %v1029 = vunpack.c.l.b16 %v895
    %v1030 = vunpack.c.h.b16 %v895
    %v1031 = vunpack.c.l.b16 %v896
    %v1032 = vunpack.c.h.b16 %v896
    %v1033 = vunpack.c.l.b16 %v897
    %v1034 = vunpack.c.h.b16 %v897
    %v1035 = vunpack.c.l.b16 %v898
    %v1036 = vunpack.c.h.b16 %v898
    %v1037 = vunpack.c.l.b16 %v899
    %v1038 = vunpack.c.h.b16 %v899
    %v1039 = vunpack.c.l.b16 %v900
    %v1040 = vunpack.c.h.b16 %v900
    %v1041 = vunpack.c.l.b16 %v901
    %v1042 = vunpack.c.h.b16 %v901
    %v1043 = vunpack.c.l.b16 %v902
    %v1044 = vunpack.c.h.b16 %v902
    %v1045 = vunpack.c.l.b16 %v903
    %v1046 = vunpack.c.h.b16 %v903
    %v1047 = vunpack.c.l.b16 %v904
    %v1048 = vunpack.c.h.b16 %v904
    %v1049 = vunpack.c.l.b16 %v905
    %v1050 = vunpack.c.h.b16 %v905
    %v1051 = vunpack.c.l.b16 %v906
    %v1052 = vunpack.c.h.b16 %v906
    %v1053 = vunpack.c.l.b16 %v907
    %v1054 = vunpack.c.h.b16 %v907
    %v1055 = vunpack.c.l.b16 %v908
    %v1056 = vunpack.c.h.b16 %v908
    %v1057 = vunpack.c.l.b16 %v909
    %v1058 = vunpack.c.h.b16 %v909
    %v1059 = vunpack.c.l.b16 %v910
    %v1060 = vunpack.c.h.b16 %v910
    %v1061 = vunpack.c.l.b16 %v911
    %v1062 = vunpack.c.h.b16 %v911
    %v1063 = vunpack.c.l.b16 %v912
    %v1064 = vunpack.c.h.b16 %v912
    %v1065 = vunpack.c.l.b16 %v913
    %v1066 = vunpack.c.h.b16 %v913
    %v1067 = vunpack.c.l.b16 %v914
    %v1068 = vunpack.c.h.b16 %v914
    %v1069 = vunpack.c.l.b16 %v915
    %v1070 = vunpack.c.h.b16 %v915
    %v1071 = vunpack.c.l.b16 %v916
    %v1072 = vunpack.c.h.b16 %v916
    %v1073 = vunpack.c.l.b16 %v917
    %v1074 = vunpack.c.h.b16 %v917
    %v1075 = vunpack.c.l.b16 %v918
    %v1076 = vunpack.c.h.b16 %v918
    %v1077 = vunpack.c.l.b16 %v919
    %v1078 = vunpack.c.h.b16 %v919
    %v1079 = vunpack.c.l.b16 %v920
    %v1080 = vunpack.c.h.b16 %v920
    %v1081 = vunpack.c.l.b16 %v921
    %v1082 = vunpack.c.h.b16 %v921
    %v1083 = vunpack.c.l.b16 %v922
    %v1084 = vunpack.c.h.b16 %v922
    %v1085 = vunpack.c.l.b16 %v923
    %v1086 = vunpack.c.h.b16 %v923
    %v1087 = vunpack.c.l.b16 %v924
    %v1088 = vunpack.c.h.b16 %v924
    %v1089 = vunpack.c.l.b16 %v925
    %v1090 = vunpack.c.h.b16 %v925
    %v1091 = vunpack.c.l.b16 %v926
    %v1092 = vunpack.c.h.b16 %v926
    %v1093 = vunpack.c.l.b16 %v927
    %v1094 = vunpack.c.h.b16 %v927
    %v1095 = vunpack.c.l.b16 %v928
    %v1096 = vunpack.c.h.b16 %v928
    %v1097 = vunpack.c.l.b16 %v929
    %v1098 = vunpack.c.h.b16 %v929
    %v1099 = vunpack.c.l.b16 %v930
    %v1100 = vunpack.c.h.b16 %v930
    %v1101 = vunpack.c.l.b16 %v931
    %v1102 = vunpack.c.h.b16 %v931
    %v1103 = vunpack.c.l.b16 %v932
    %v1104 = vunpack.c.h.b16 %v932
    %v1105 = vunpack.c.l.b16 %v933
    %v1106 = vunpack.c.h.b16 %v933
    %v1107 = vunpack.c.l.b16 %v934
    %v1108 = vunpack.c.h.b16 %v934
    %v1109 = vunpack.c.l.b16 %v935
    %v1110 = vunpack.c.h.b16 %v935
    %v1111 = vunpack.c.l.b16 %v936
    %v1112 = vunpack.c.h.b16 %v936
    %v1113 = vunpack.c.l.b16 %v937
    %v1114 = vunpack.c.h.b16 %v937
    %v1115 = vunpack.c.l.b16 %v938
    %v1116 = vunpack.c.h.b16 %v938
    %v1117 = vunpack.c.l.b16 %v939
    %v1118 = vunpack.c.h.b16 %v939
    %v1119 = vunpack.c.l.b16 %v940
    %v1120 = vunpack.c.h.b16 %v940
    %v1121 = vunpack.c.l.b16 %v941
    %v1122 = vunpack.c.h.b16 %v941
    %v1123 = vunpack.c.l.b16 %v942
    %v1124 = vunpack.c.h.b16 %v942
    %v1125 = vunpack.c.l.b16 %v943
    %v1126 = vunpack.c.h.b16 %v943
    %v1127 = vunpack.c.l.b16 %v944
    %v1128 = vunpack.c.h.b16 %v944
    %v1129 = vunpack.c.l.b16 %v945
    %v1130 = vunpack.c.h.b16 %v945
    %v1131 = vunpack.c.l.b16 %v946
    %v1132 = vunpack.c.h.b16 %v946
    %v1133 = vunpack.c.l.b16 %v947
    %v1134 = vunpack.c.h.b16 %v947
    %v1135 = vunpack.c.l.b16 %v948
    %v1136 = vunpack.c.h.b16 %v948
    %v1137 = vunpack.c.l.b16 %v949
    %v1138 = vunpack.c.h.b16 %v949
    %v1139 = vunpack.c.l.b16 %v950
    %v1140 = vunpack.c.h.b16 %v950
    %v1141 = vunpack.c.l.b16 %v951
    %v1142 = vunpack.c.h.b16 %v951
    %v1143 = vunpack.c.l.b16 %v952
    %v1144 = vunpack.c.h.b16 %v952
    %v1145 = vpack.c.b16 %v1017, %v1017
    %v1146 = vpack.c.b16 %v1018, %v1018
    %v1147 = vpack.c.b16 %v1019, %v1019
    %v1148 = vpack.c.b16 %v1020, %v1020
    %v1149 = vpack.c.b16 %v1021, %v1021
    %v1150 = vpack.c.b16 %v1022, %v1022
    %v1151 = vpack.c.b16 %v1023, %v1023
    %v1152 = vpack.c.b16 %v1024, %v1024
    %v1153 = vpack.c.b16 %v1025, %v1025
    %v1154 = vpack.c.b16 %v1026, %v1026
    %v1155 = vpack.c.b16 %v1027, %v1027
    %v1156 = vpack.c.b16 %v1028, %v1028
    %v1157 = vpack.c.b16 %v1029, %v1029
    %v1158 = vpack.c.b16 %v1030, %v1030
    %v1159 = vpack.c.b16 %v1031, %v1031
    %v1160 = vpack.c.b16 %v1032, %v1032
    %v1161 = vpack.c.b16 %v1033, %v1033
    %v1162 = vpack.c.b16 %v1034, %v1034
    %v1163 = vpack.c.b16 %v1035, %v1035
    %v1164 = vpack.c.b16 %v1036, %v1036
    %v1165 = vpack.c.b16 %v1037, %v1037
    %v1166 = vpack.c.b16 %v1038, %v1038
    %v1167 = vpack.c.b16 %v1039, %v1039
    %v1168 = vpack.c.b16 %v1040, %v1040
    %v1169 = vpack.c.b16 %v1041, %v1041
    %v1170 = vpack.c.b16 %v1042, %v1042
    %v1171 = vpack.c.b16 %v1043, %v1043
    %v1172 = vpack.c.b16 %v1044, %v1044
    %v1173 = vpack.c.b16 %v1045, %v1045
    %v1174 = vpack.c.b16 %v1046, %v1046
    %v1175 = vpack.c.b16 %v1047, %v1047
    %v1176 = vpack.c.b16 %v1048, %v1048
    %v1177 = vpack.c.b16 %v1049, %v1049
    %v1178 = vpack.c.b16 %v1050, %v1050
    %v1179 = vpack.c.b16 %v1051, %v1051
    %v1180 = vpack.c.b16 %v1052, %v1052
    %v1181 = vpack.c.b16 %v1053, %v1053
    %v1182 = vpack.c.b16 %v1054, %v1054
    %v1183 = vpack.c.b16 %v1055, %v1055
    %v1184 = vpack.c.b16 %v1056, %v1056
    %v1185 = vpack.c.b16 %v1057, %v1057
    %v1186 = vpack.c.b16 %v1058, %v1058
    %v1187 = vpack.c.b16 %v1059, %v1059
    %v1188 = vpack.c.b16 %v1060, %v1060
    %v1189 = vpack.c.b16 %v1061, %v1061
    %v1190 = vpack.c.b16 %v1062, %v1062
    %v1191 = vpack.c.b16 %v1063, %v1063
    %v1192 = vpack.c.b16 %v1064, %v1064
    %v1193 = vpack.c.b16 %v1065, %v1065
    %v1194 = vpack.c.b16 %v1066, %v1066
    %v1195 = vpack.c.b16 %v1067, %v1067
    %v1196 = vpack.c.b16 %v1068, %v1068
    %v1197 = vpack.c.b16 %v1069, %v1069
    %v1198 = vpack.c.b16 %v1070, %v1070
    %v1199 = vpack.c.b16 %v1071, %v1071
    %v1200 = vpack.c.b16 %v1072, %v1072
    %v1201 = vpack.c.b16 %v1073, %v1073
    %v1202 = vpack.c.b16 %v1074, %v1074
    %v1203 = vpack.c.b16 %v1075, %v1075
    %v1204 = vpack.c.b16 %v1076, %v1076
    %v1205 = vpack.c.b16 %v1077, %v1077
    %v1206 = vpack.c.b16 %v1078, %v1078
    %v1207 = vpack.c.b16 %v1079, %v1079
    %v1208 = vpack.c.b16 %v1080, %v1080
    %v1209 = vpack.c.b16 %v1081, %v1081
    %v1210 = vpack.c.b16 %v1082, %v1082
    %v1211 = vpack.c.b16 %v1083, %v1083
    %v1212 = vpack.c.b16 %v1084, %v1084
    %v1213 = vpack.c.b16 %v1085, %v1085
    %v1214 = vpack.c.b16 %v1086, %v1086
    %v1215 = vpack.c.b16 %v1087, %v1087
    %v1216 = vpack.c.b16 %v1088, %v1088
    %v1217 = vpack.c.b16 %v1089, %v1089
    %v1218 = vpack.c.b16 %v1090, %v1090
    %v1219 = vpack.c.b16 %v1091, %v1091
    %v1220 = vpack.c.b16 %v1092, %v1092
    %v1221 = vpack.c.b16 %v1093, %v1093
    %v1222 = vpack.c.b16 %v1094, %v1094
    %v1223 = vpack.c.b16 %v1095, %v1095
    %v1224 = vpack.c.b16 %v1096, %v1096
    %v1225 = vpack.c.b16 %v1097, %v1097
    %v1226 = vpack.c.b16 %v1098, %v1098
    %v1227 = vpack.c.b16 %v1099, %v1099
    %v1228 = vpack.c.b16 %v1100, %v1100
    %v1229 = vpack.c.b16 %v1101, %v1101
    %v1230 = vpack.c.b16 %v1102, %v1102
    %v1231 = vpack.c.b16 %v1103, %v1103
    %v1232 = vpack.c.b16 %v1104, %v1104
    %v1233 = vpack.c.b16 %v1105, %v1105
    %v1234 = vpack.c.b16 %v1106, %v1106
    %v1235 = vpack.c.b16 %v1107, %v1107
    %v1236 = vpack.c.b16 %v1108, %v1108
    %v1237 = vpack.c.b16 %v1109, %v1109
    %v1238 = vpack.c.b16 %v1110, %v1110
    %v1239 = vpack.c.b16 %v1111, %v1111
    %v1240 = vpack.c.b16 %v1112, %v1112
    %v1241 = vpack.c.b16 %v1113, %v1113
    %v1242 = vpack.c.b16 %v1114, %v1114
    %v1243 = vpack.c.b16 %v1115, %v1115
    %v1244 = vpack.c.b16 %v1116, %v1116
    %v1245 = vpack.c.b16 %v1117, %v1117
    %v1246 = vpack.c.b16 %v1118, %v1118
    %v1247 = vpack.c.b16 %v1119, %v1119
    %v1248 = vpack.c.b16 %v1120, %v1120
    %v1249 = vpack.c.b16 %v1121, %v1121
    %v1250 = vpack.c.b16 %v1122, %v1122
    %v1251 = vpack.c.b16 %v1123, %v1123
    %v1252 = vpack.c.b16 %v1124, %v1124
    %v1253 = vpack.c.b16 %v1125, %v1125
    %v1254 = vpack.c.b16 %v1126, %v1126
    %v1255 = vpack.c.b16 %v1127, %v1127
    %v1256 = vpack.c.b16 %v1128, %v1128
    %v1257 = vpack.c.b16 %v1129, %v1129
    %v1258 = vpack.c.b16 %v1130, %v1130
    %v1259 = vpack.c.b16 %v1131, %v1131
    %v1260 = vpack.c.b16 %v1132, %v1132
    %v1261 = vpack.c.b16 %v1133, %v1133
    %v1262 = vpack.c.b16 %v1134, %v1134
    %v1263 = vpack.c.b16 %v1135, %v1135
    %v1264 = vpack.c.b16 %v1136, %v1136
    %v1265 = vpack.c.b16 %v1137, %v1137
    %v1266 = vpack.c.b16 %v1138, %v1138
    %v1267 = vpack.c.b16 %v1139, %v1139
    %v1268 = vpack.c.b16 %v1140, %v1140
    %v1269 = vpack.c.b16 %v1141, %v1141
    %v1270 = vpack.c.b16 %v1142, %v1142
    %v1271 = vpack.c.b16 %v1143, %v1143
    %v1272 = vpack.c.b16 %v1144, %v1144
    %1401 = vst [vmem:[#allocation7] sm:$0xf] %v1145
    %1402 = vst [vmem:[#allocation7 + $0x4] sm:$0xf] %v1146
    %1403 = vst [vmem:[#allocation7 + $0x8] sm:$0xf] %v1147
    %1404 = vst [vmem:[#allocation7 + $0xc] sm:$0xf] %v1148
    %1405 = vst [vmem:[#allocation7 + $0x10] sm:$0xf] %v1149
    %1406 = vst [vmem:[#allocation7 + $0x14] sm:$0xf] %v1150
    %1407 = vst [vmem:[#allocation7 + $0x18] sm:$0xf] %v1151
    %1408 = vst [vmem:[#allocation7 + $0x1c] sm:$0xf] %v1152
    %1409 = vst [vmem:[#allocation7 + $0x20] sm:$0xf] %v1153
    %1410 = vst [vmem:[#allocation7 + $0x24] sm:$0xf] %v1154
    %1411 = vst [vmem:[#allocation7 + $0x28] sm:$0xf] %v1155
    %1412 = vst [vmem:[#allocation7 + $0x2c] sm:$0xf] %v1156
    %1413 = vst [vmem:[#allocation7 + $0x30] sm:$0xf] %v1157
    %1414 = vst [vmem:[#allocation7 + $0x34] sm:$0xf] %v1158
    %1415 = vst [vmem:[#allocation7 + $0x38] sm:$0xf] %v1159
    %1416 = vst [vmem:[#allocation7 + $0x3c] sm:$0xf] %v1160
    %1417 = vst [vmem:[#allocation7 + $0x40] sm:$0xf] %v1161
    %1418 = vst [vmem:[#allocation7 + $0x44] sm:$0xf] %v1162
    %1419 = vst [vmem:[#allocation7 + $0x48] sm:$0xf] %v1163
    %1420 = vst [vmem:[#allocation7 + $0x4c] sm:$0xf] %v1164
    %1421 = vst [vmem:[#allocation7 + $0x50] sm:$0xf] %v1165
    %1422 = vst [vmem:[#allocation7 + $0x54] sm:$0xf] %v1166
    %1423 = vst [vmem:[#allocation7 + $0x58] sm:$0xf] %v1167
    %1424 = vst [vmem:[#allocation7 + $0x5c] sm:$0xf] %v1168
    %1425 = vst [vmem:[#allocation7 + $0x60] sm:$0xf] %v1169
    %1426 = vst [vmem:[#allocation7 + $0x64] sm:$0xf] %v1170
    %1427 = vst [vmem:[#allocation7 + $0x68] sm:$0xf] %v1171
    %1428 = vst [vmem:[#allocation7 + $0x6c] sm:$0xf] %v1172
    %1429 = vst [vmem:[#allocation7 + $0x70] sm:$0xf] %v1173
    %1430 = vst [vmem:[#allocation7 + $0x74] sm:$0xf] %v1174
    %1431 = vst [vmem:[#allocation7 + $0x78] sm:$0xf] %v1175
    %1432 = vst [vmem:[#allocation7 + $0x7c] sm:$0xf] %v1176
    %1433 = vst [vmem:[#allocation7 + $0x80] sm:$0xf] %v1177
    %1434 = vst [vmem:[#allocation7 + $0x84] sm:$0xf] %v1178
    %1435 = vst [vmem:[#allocation7 + $0x88] sm:$0xf] %v1179
    %1436 = vst [vmem:[#allocation7 + $0x8c] sm:$0xf] %v1180
    %1437 = vst [vmem:[#allocation7 + $0x90] sm:$0xf] %v1181
    %1438 = vst [vmem:[#allocation7 + $0x94] sm:$0xf] %v1182
    %1439 = vst [vmem:[#allocation7 + $0x98] sm:$0xf] %v1183
    %1440 = vst [vmem:[#allocation7 + $0x9c] sm:$0xf] %v1184
    %1441 = vst [vmem:[#allocation7 + $0xa0] sm:$0xf] %v1185
    %1442 = vst [vmem:[#allocation7 + $0xa4] sm:$0xf] %v1186
    %1443 = vst [vmem:[#allocation7 + $0xa8] sm:$0xf] %v1187
    %1444 = vst [vmem:[#allocation7 + $0xac] sm:$0xf] %v1188
    %1445 = vst [vmem:[#allocation7 + $0xb0] sm:$0xf] %v1189
    %1446 = vst [vmem:[#allocation7 + $0xb4] sm:$0xf] %v1190
    %1447 = vst [vmem:[#allocation7 + $0xb8] sm:$0xf] %v1191
    %1448 = vst [vmem:[#allocation7 + $0xbc] sm:$0xf] %v1192
    %1449 = vst [vmem:[#allocation7 + $0xc0] sm:$0xf] %v1193
    %1450 = vst [vmem:[#allocation7 + $0xc4] sm:$0xf] %v1194
    %1451 = vst [vmem:[#allocation7 + $0xc8] sm:$0xf] %v1195
    %1452 = vst [vmem:[#allocation7 + $0xcc] sm:$0xf] %v1196
    %1453 = vst [vmem:[#allocation7 + $0xd0] sm:$0xf] %v1197
    %1454 = vst [vmem:[#allocation7 + $0xd4] sm:$0xf] %v1198
    %1455 = vst [vmem:[#allocation7 + $0xd8] sm:$0xf] %v1199
    %1456 = vst [vmem:[#allocation7 + $0xdc] sm:$0xf] %v1200
    %1457 = vst [vmem:[#allocation7 + $0xe0] sm:$0xf] %v1201
    %1458 = vst [vmem:[#allocation7 + $0xe4] sm:$0xf] %v1202
    %1459 = vst [vmem:[#allocation7 + $0xe8] sm:$0xf] %v1203
    %1460 = vst [vmem:[#allocation7 + $0xec] sm:$0xf] %v1204
    %1461 = vst [vmem:[#allocation7 + $0xf0] sm:$0xf] %v1205
    %1462 = vst [vmem:[#allocation7 + $0xf4] sm:$0xf] %v1206
    %1463 = vst [vmem:[#allocation7 + $0xf8] sm:$0xf] %v1207
    %1464 = vst [vmem:[#allocation7 + $0xfc] sm:$0xf] %v1208
    %1465 = vst [vmem:[#allocation7 + $0x100] sm:$0xf] %v1209
    %1466 = vst [vmem:[#allocation7 + $0x104] sm:$0xf] %v1210
    %1467 = vst [vmem:[#allocation7 + $0x108] sm:$0xf] %v1211
    %1468 = vst [vmem:[#allocation7 + $0x10c] sm:$0xf] %v1212
    %1469 = vst [vmem:[#allocation7 + $0x110] sm:$0xf] %v1213
    %1470 = vst [vmem:[#allocation7 + $0x114] sm:$0xf] %v1214
    %1471 = vst [vmem:[#allocation7 + $0x118] sm:$0xf] %v1215
    %1472 = vst [vmem:[#allocation7 + $0x11c] sm:$0xf] %v1216
    %1473 = vst [vmem:[#allocation7 + $0x120] sm:$0xf] %v1217
    %1474 = vst [vmem:[#allocation7 + $0x124] sm:$0xf] %v1218
    %1475 = vst [vmem:[#allocation7 + $0x128] sm:$0xf] %v1219
    %1476 = vst [vmem:[#allocation7 + $0x12c] sm:$0xf] %v1220
    %1477 = vst [vmem:[#allocation7 + $0x130] sm:$0xf] %v1221
    %1478 = vst [vmem:[#allocation7 + $0x134] sm:$0xf] %v1222
    %1479 = vst [vmem:[#allocation7 + $0x138] sm:$0xf] %v1223
    %1480 = vst [vmem:[#allocation7 + $0x13c] sm:$0xf] %v1224
    %1481 = vst [vmem:[#allocation7 + $0x140] sm:$0xf] %v1225
    %1482 = vst [vmem:[#allocation7 + $0x144] sm:$0xf] %v1226
    %1483 = vst [vmem:[#allocation7 + $0x148] sm:$0xf] %v1227
    %1484 = vst [vmem:[#allocation7 + $0x14c] sm:$0xf] %v1228
    %1485 = vst [vmem:[#allocation7 + $0x150] sm:$0xf] %v1229
    %1486 = vst [vmem:[#allocation7 + $0x154] sm:$0xf] %v1230
    %1487 = vst [vmem:[#allocation7 + $0x158] sm:$0xf] %v1231
    %1488 = vst [vmem:[#allocation7 + $0x15c] sm:$0xf] %v1232
    %1489 = vst [vmem:[#allocation7 + $0x160] sm:$0xf] %v1233
    %1490 = vst [vmem:[#allocation7 + $0x164] sm:$0xf] %v1234
    %1491 = vst [vmem:[#allocation7 + $0x168] sm:$0xf] %v1235
    %1492 = vst [vmem:[#allocation7 + $0x16c] sm:$0xf] %v1236
    %1493 = vst [vmem:[#allocation7 + $0x170] sm:$0xf] %v1237
    %1494 = vst [vmem:[#allocation7 + $0x174] sm:$0xf] %v1238
    %1495 = vst [vmem:[#allocation7 + $0x178] sm:$0xf] %v1239
    %1496 = vst [vmem:[#allocation7 + $0x17c] sm:$0xf] %v1240
    %1497 = vst [vmem:[#allocation7 + $0x180] sm:$0xf] %v1241
    %1498 = vst [vmem:[#allocation7 + $0x184] sm:$0xf] %v1242
    %1499 = vst [vmem:[#allocation7 + $0x188] sm:$0xf] %v1243
    %1500 = vst [vmem:[#allocation7 + $0x18c] sm:$0xf] %v1244
    %1501 = vst [vmem:[#allocation7 + $0x190] sm:$0xf] %v1245
    %1502 = vst [vmem:[#allocation7 + $0x194] sm:$0xf] %v1246
    %1503 = vst [vmem:[#allocation7 + $0x198] sm:$0xf] %v1247
    %1504 = vst [vmem:[#allocation7 + $0x19c] sm:$0xf] %v1248
    %1505 = vst [vmem:[#allocation7 + $0x1a0] sm:$0xf] %v1249
    %1506 = vst [vmem:[#allocation7 + $0x1a4] sm:$0xf] %v1250
    %1507 = vst [vmem:[#allocation7 + $0x1a8] sm:$0xf] %v1251
    %1508 = vst [vmem:[#allocation7 + $0x1ac] sm:$0xf] %v1252
    %1509 = vst [vmem:[#allocation7 + $0x1b0] sm:$0xf] %v1253
    %1510 = vst [vmem:[#allocation7 + $0x1b4] sm:$0xf] %v1254
    %1511 = vst [vmem:[#allocation7 + $0x1b8] sm:$0xf] %v1255
    %1512 = vst [vmem:[#allocation7 + $0x1bc] sm:$0xf] %v1256
    %1513 = vst [vmem:[#allocation7 + $0x1c0] sm:$0xf] %v1257
    %1514 = vst [vmem:[#allocation7 + $0x1c4] sm:$0xf] %v1258
    %1515 = vst [vmem:[#allocation7 + $0x1c8] sm:$0xf] %v1259
    %1516 = vst [vmem:[#allocation7 + $0x1cc] sm:$0xf] %v1260
    %1517 = vst [vmem:[#allocation7 + $0x1d0] sm:$0xf] %v1261
    %1518 = vst [vmem:[#allocation7 + $0x1d4] sm:$0xf] %v1262
    %1519 = vst [vmem:[#allocation7 + $0x1d8] sm:$0xf] %v1263
    %1520 = vst [vmem:[#allocation7 + $0x1dc] sm:$0xf] %v1264
    %1521 = vst [vmem:[#allocation7 + $0x1e0] sm:$0xf] %v1265
    %1522 = vst [vmem:[#allocation7 + $0x1e4] sm:$0xf] %v1266
    %1523 = vst [vmem:[#allocation7 + $0x1e8] sm:$0xf] %v1267
    %1524 = vst [vmem:[#allocation7 + $0x1ec] sm:$0xf] %v1268
    %1525 = vst [vmem:[#allocation7 + $0x1f0] sm:$0xf] %v1269
    %1526 = vst [vmem:[#allocation7 + $0x1f4] sm:$0xf] %v1270
    %1527 = vst [vmem:[#allocation7 + $0x1f8] sm:$0xf] %v1271
    %1528 = vst [vmem:[#allocation7 + $0x1fc] sm:$0xf] %v1272
    // Predicated region
    $region18: #{tpu_custom_call.1} parent=1 // pred_check
      _
    $region19: #{tpu_custom_call.1} parent=1 // pred_check_branch
      %1530 = sbr.rel (0) target = $region21
    $region20: #{tpu_custom_call.1} parent=1 // pred_region
      %s1532 = ssub.s32 8192, 8192
      %1533 = vsyncadd [#allocation4], %s1532
      %s1534 = sshll.u32 [#allocation7], 4
      %s1535 = int_to_ptr.vmem [resolvable:$true] %s1534
      %1540 = dma.vmem_to_hbm [thread:$0]  %s1535, 8192, %s2, [#allocation4], 64, 64, 4
    $region21: #{tpu_custom_call.1} parent=1 // pred_fallthru
      _
    // Predicated region
    $region22: #{tpu_custom_call.1} parent=1 // pred_check
      _
    $region23: #{tpu_custom_call.1} parent=1 // pred_check_branch
      %1542 = sbr.rel (0) target = $region25
    $region24: #{tpu_custom_call.1} parent=1 // pred_region
      %1543 = dma.done [#allocation4], 8192
    $region25: #{tpu_custom_call.1} parent=1 // pred_fallthru
      _
    %1544 = vsyncpa [#allocation3], 1
    %1545 = vsyncpa [#allocation6], 1
    %1546 = vsyncpa [#allocation4], 1

</llo_original>
